<compile_context>
chip_gen: v7x
topology: tpu7x:2x2x1
jax: 0.10.0
libtpu: 0.0.40
codegen_flags: <defaults>
</compile_context>

<pallas_src>
import functools

import jax
import jax.numpy as jnp
from jax import lax
from jax.experimental import pallas as pl
from jax.experimental.pallas import tpu as pltpu

CLS_PAD = 128     # one full lane tile per model's class block
MAX_TB = 512      # batch tile cap: big enough to amortize per-step overhead,
                  # small enough that realistic batches keep >=2 parallel grid
                  # steps (v7x megacore) and stay far under v7x VMEM budgets.


def _round_up(x, m):
    return ((x + m - 1) // m) * m


def _ensemble_kernel(xi_ref, xs_ref, w1i_ref, w1s_ref, b1_ref, w2_ref, b2_ref,
                     out_ref, prob_ref, *, num_models, n_cls, cls_pad):
    """One grid step = one batch tile; ALL models fused.

    xi_ref  : (TB, D_img)            bf16 flattened image tile
    xs_ref  : (TB, D_sen)            bf16 sensor tile
    w1i_ref : (D_img, H_pad)         bf16, per-model hidden units packed on lanes
    w1s_ref : (D_sen, H_pad)         bf16
    b1_ref  : (1, H_pad)             f32
    w2_ref  : (H_pad, (M+1)*cls_pad) bf16; blocks 0..M-1 are block-diagonal per
              model, block M stacks all models' W_out so the MXU emits the
              across-model logits sum directly.
    b2_ref  : (1, (M+1)*cls_pad)     f32 (last block = sum of per-model biases)
    out_ref, prob_ref : (TB, cls_pad) f32 lane-dense outputs (first n_cls real)
    """
    # --- first layer: two bf16 MXU matmuls, f32 accumulation -----------------
    h = (jnp.dot(xi_ref[...], w1i_ref[...], preferred_element_type=jnp.float32)
         + jnp.dot(xs_ref[...], w1s_ref[...], preferred_element_type=jnp.float32)
         + b1_ref[...])
    h = jnp.maximum(h, 0.0).astype(w2_ref.dtype)          # (TB, H_pad) bf16

    tb = out_ref.shape[0]
    lane = lax.broadcasted_iota(jnp.int32, (tb, cls_pad), 1)
    cls_mask = lane < n_cls
    neg_big = jnp.float32(-1e30)
    inv_m = jnp.float32(1.0 / num_models)

    # --- averaged logits straight off the MXU (appended "sum" column block) --
    s0 = num_models * cls_pad
    sum_logits = (jnp.dot(h, w2_ref[:, s0:s0 + cls_pad],
                          preferred_element_type=jnp.float32)
                  + b2_ref[:, s0:s0 + cls_pad])
    out_ref[...] = (sum_logits * inv_m).astype(out_ref.dtype)

    # --- per-model softmax; only one (TB, cls_pad) logits tile live at a time
    prob_sum = jnp.zeros((tb, cls_pad), jnp.float32)
    for m in range(num_models):          # static unroll, tile-aligned ref slices
        c0 = m * cls_pad
        lm = (jnp.dot(h, w2_ref[:, c0:c0 + cls_pad],
                      preferred_element_type=jnp.float32)
              + b2_ref[:, c0:c0 + cls_pad])                # pads are exactly 0
        lm = jnp.where(cls_mask, lm, neg_big)              # mask pad lanes
        mx = jnp.max(lm, axis=-1, keepdims=True)
        e = jnp.exp(lm - mx)
        denom = jnp.sum(e, axis=-1, keepdims=True)
        prob_sum = prob_sum + e * pl.reciprocal(denom, approx=True)  # EUP vrcp
    prob_ref[...] = (prob_sum * inv_m).astype(prob_ref.dtype)
    # TODO(synk): if profiling shows the softmax tail EUP/XLU-bound at large TB,
    # pack all M models' classes into a single 128-lane tile and recover the
    # per-model denominators with a block-diagonal ones matmul on the MXU.


def pack_bagging_params(params, *, compute_dtype=jnp.bfloat16, cls_pad=CLS_PAD):
    """One-time packing of per-model weights into lane-dense MXU layouts.

    Hoisted out of the forward path: call once at init, reuse the packed
    tensors for every forward call.
    """
    w_img, w_sen, b_h = params["w_img"], params["w_sen"], params["b_h"]
    w_out, b_out = params["w_out"], params["b_out"]

    M, D_img, H = w_img.shape
    D_sen = w_sen.shape[1]
    n_cls = w_out.shape[2]

    # Hidden units of all models packed along lanes, padded to a lane tile.
    # TODO(synk): on v6e/v7x pad toward 256 once M*H > 128 (MXU-native width).
    H_pad = _round_up(M * H, 128)

    def _pack_first(w):                                   # (M, D, H) -> (D, H_pad)
        d = w.shape[1]
        flat = jnp.transpose(w, (1, 0, 2)).reshape(d, M * H)
        if H_pad > M * H:
            flat = jnp.pad(flat, ((0, 0), (0, H_pad - M * H)))
        return flat.astype(compute_dtype)

    w1_img = _pack_first(w_img)                           # (D_img, H_pad)
    w1_sen = _pack_first(w_sen)                           # (D_sen, H_pad)
    b1 = jnp.zeros((1, H_pad), jnp.float32).at[0, :M * H].set(
        b_h[:, 0, :].reshape(M * H).astype(jnp.float32))

    # Second layer: M block-diagonal class blocks (per-model softmax) plus one
    # extra block stacking every model's W_out -> MXU emits the logits sum.
    w2 = jnp.zeros((H_pad, (M + 1) * cls_pad), jnp.float32)
    b2 = jnp.zeros((1, (M + 1) * cls_pad), jnp.float32)
    for m in range(M):
        w2 = w2.at[m * H:(m + 1) * H, m * cls_pad:m * cls_pad + n_cls].set(w_out[m])
        w2 = w2.at[m * H:(m + 1) * H, M * cls_pad:M * cls_pad + n_cls].set(w_out[m])
        b2 = b2.at[0, m * cls_pad:m * cls_pad + n_cls].set(b_out[m, 0])
    b2 = b2.at[0, M * cls_pad:M * cls_pad + n_cls].set(jnp.sum(b_out[:, 0, :], axis=0))

    return {
        "w1_img": w1_img, "w1_sen": w1_sen, "b1": b1,
        "w2": w2.astype(compute_dtype), "b2": b2,
        "num_models": M, "n_cls": n_cls, "d_img": D_img, "d_sen": D_sen,
        "h_pad": H_pad, "cls_pad": cls_pad, "compute_dtype": compute_dtype,
    }


def bagging_ensemble_forward(image, sensor, packed):
    """image (B,C,H,W), sensor (B,D_sen) -> (avg_output, avg_y_pred_prob), (B,n_cls)."""
    M, n_cls = packed["num_models"], packed["n_cls"]
    D_img, D_sen = packed["d_img"], packed["d_sen"]
    H_pad, cls_pad = packed["h_pad"], packed["cls_pad"]
    cdt = packed["compute_dtype"]

    B = image.shape[0]
    img_flat = image.reshape(B, -1)
    assert img_flat.shape[1] == D_img and sensor.shape[1] == D_sen

    # Batch tiling: large tiles amortize the ~0.35us/step overhead; cap so a
    # big batch keeps >=2 grid steps ("parallel" -> both v7x TensorCores).
    B8 = _round_up(B, 8)
    if B8 <= MAX_TB:
        TB, B_pad = B8, B8
    else:
        TB = MAX_TB
        B_pad = _round_up(B8, TB)

    def _pad_batch(x):
        x = x.astype(cdt)
        if x.shape[0] == B_pad:
            return x
        return jnp.zeros((B_pad, x.shape[1]), cdt).at[:B].set(x)

    xi = _pad_batch(img_flat)      # (B_pad, D_img)  -- no concat, no K padding
    xs = _pad_batch(sensor)        # (B_pad, D_sen)

    kernel = functools.partial(_ensemble_kernel, num_models=M, n_cls=n_cls,
                               cls_pad=cls_pad)

    n_blocks = M + 1
    itm = jnp.dtype(cdt).itemsize

    # Explicit VMEM budget (safe under v7x 64 MiB physical / 32 MiB scoped).
    act_bytes = 2 * TB * (D_img + D_sen) * itm                     # dbl-buffered x
    w_bytes = 2 * ((D_img + D_sen) * H_pad + H_pad * n_blocks * cls_pad) * itm
    out_bytes = 2 * 2 * TB * cls_pad * 4                           # two f32 outputs
    vmem_limit = int(min(max(4 * (act_bytes + w_bytes + out_bytes), 8 << 20),
                         32 << 20))

    cost = pl.CostEstimate(
        flops=int(2 * B_pad * ((D_img + D_sen) * H_pad
                               + H_pad * n_blocks * cls_pad)),
        transcendentals=int(B_pad * M * (cls_pad + 1)),
        bytes_accessed=int(B_pad * (D_img + D_sen) * itm
                           + ((D_img + D_sen) * H_pad
                              + H_pad * n_blocks * cls_pad) * itm
                           + (H_pad + n_blocks * cls_pad) * 4
                           + 2 * B_pad * cls_pad * 4),
    )

    grid_spec = pltpu.PrefetchScalarGridSpec(
        num_scalar_prefetch=0,
        grid=(B_pad // TB,),
        in_specs=[
            pl.BlockSpec((TB, D_img), lambda i: (i, 0)),            # image tile
            pl.BlockSpec((TB, D_sen), lambda i: (i, 0)),            # sensor tile
            pl.BlockSpec((D_img, H_pad), lambda i: (0, 0)),         # packed W1_img
            pl.BlockSpec((D_sen, H_pad), lambda i: (0, 0)),         # packed W1_sen
            pl.BlockSpec((1, H_pad), lambda i: (0, 0)),             # packed b1
            pl.BlockSpec((H_pad, n_blocks * cls_pad), lambda i: (0, 0)),  # W2
            pl.BlockSpec((1, n_blocks * cls_pad), lambda i: (0, 0)),      # b2
        ],
        out_specs=[
            pl.BlockSpec((TB, cls_pad), lambda i: (i, 0)),
            pl.BlockSpec((TB, cls_pad), lambda i: (i, 0)),
        ],
    )

    out_p, prob_p = pl.pallas_call(
        kernel,
        out_shape=(jax.ShapeDtypeStruct((B_pad, cls_pad), jnp.float32),
                   jax.ShapeDtypeStruct((B_pad, cls_pad), jnp.float32)),
        grid_spec=grid_spec,
        compiler_params=pltpu.CompilerParams(
            dimension_semantics=("parallel",),      # batch tiles are independent
            vmem_limit_bytes=vmem_limit),
        cost_estimate=cost,
    )(xi, xs, packed["w1_img"], packed["w1_sen"], packed["b1"],
      packed["w2"], packed["b2"])

    return out_p[:B, :n_cls], prob_p[:B, :n_cls]


def _reference_forward(image, sensor, params, matmul_dtype=jnp.float32):
    """Pure-JAX reference (matches PyTorch ensemble semantics).

    matmul_dtype=bf16 reproduces the kernel's MXU precision (f32 accumulation)
    so the kernel can be checked tightly; f32 gives the exact-math baseline.
    """
    B = image.shape[0]
    img = image.reshape(B, -1).astype(matmul_dtype)
    sen = sensor.astype(matmul_dtype)
    outs, probs = [], []
    for m in range(params["w_img"].shape[0]):
        h = jnp.maximum(
            jnp.dot(img, params["w_img"][m].astype(matmul_dtype),
                    preferred_element_type=jnp.float32)
            + jnp.dot(sen, params["w_sen"][m].astype(matmul_dtype),
                      preferred_element_type=jnp.float32)
            + params["b_h"][m, 0], 0.0)
        logits = (jnp.dot(h.astype(matmul_dtype),
                          params["w_out"][m].astype(matmul_dtype),
                          preferred_element_type=jnp.float32)
                  + params["b_out"][m, 0])
        outs.append(logits)
        probs.append(jax.nn.softmax(logits, axis=-1))
    return (jnp.mean(jnp.stack(outs), axis=0),
            jnp.mean(jnp.stack(probs), axis=0))


def _init_params(key, num_models, d_img, d_sen, hidden, n_cls):
    ks = jax.random.split(key, 5)
    scale = 0.05
    return {
        "w_img": scale * jax.random.normal(ks[0], (num_models, d_img, hidden), jnp.float32),
        "w_sen": scale * jax.random.normal(ks[1], (num_models, d_sen, hidden), jnp.float32),
        "b_h":   scale * jax.random.normal(ks[2], (num_models, 1, hidden), jnp.float32),
        "w_out": scale * jax.random.normal(ks[3], (num_models, hidden, n_cls), jnp.float32),
        "b_out": scale * jax.random.normal(ks[4], (num_models, 1, n_cls), jnp.float32),
    }


if __name__ == "__main__":
    key = jax.random.PRNGKey(0)
    k_img, k_sen, k_par = jax.random.split(key, 3)

    B, C, Himg, Wimg = 2, 4, 16, 16      # image NCHW
    D_sen = 8                            # sensor features
    hidden = 32
    n_cls = 8
    num_models = 3

    image = jax.random.normal(k_img, (B, C, Himg, Wimg), jnp.float32)
    sensor = jax.random.normal(k_sen, (B, D_sen), jnp.float32)
    params = _init_params(k_par, num_models, C * Himg * Wimg, D_sen, hidden, n_cls)

    packed = pack_bagging_params(params)                 # once, outside hot path
    packed = jax.tree_util.tree_map(
        lambda x: jax.block_until_ready(x) if isinstance(x, jax.Array) else x, packed)

    out, prob = bagging_ensemble_forward(image, sensor, packed)
    out = jax.block_until_ready(out)
    prob = jax.block_until_ready(prob)
    assert out.shape == (B, n_cls) and prob.shape == (B, n_cls)

    # Tight check against a reference with the SAME bf16 MXU rounding
    # (kernel-specific error sources left: f32 accumulation order + EUP vrcp).
    ref_out_bf, ref_prob_bf = _reference_forward(image, sensor, params,
                                                 matmul_dtype=jnp.bfloat16)
    assert jnp.allclose(out, ref_out_bf, atol=1e-3, rtol=1e-3)
    assert jnp.allclose(prob, ref_prob_bf, atol=3e-3, rtol=3e-3)

    # Loose check against the full-f32 math (bf16 matmul precision over K~1032).
    ref_out, ref_prob = _reference_forward(image, sensor, params)
    assert jnp.allclose(out, ref_out, atol=5e-2, rtol=5e-2)
    assert jnp.allclose(prob, ref_prob, atol=5e-2, rtol=5e-2)

    # Averaged probabilities should still sum to ~1 (approx reciprocal + bf16).
    assert jnp.allclose(prob.sum(axis=-1), 1.0, atol=5e-3)

    print("KERNEL_OK")
</pallas_src>

<mosaic_0001>
module attributes {stable_mosaic.version = 11 : i64} {
  func.func @_ensemble_kernel(%arg0: i32, %arg1: memref<8x1024xbf16, #tpu.memory_space<vmem>>, %arg2: memref<8x8xbf16, #tpu.memory_space<vmem>>, %arg3: memref<1024x128xbf16, #tpu.memory_space<vmem>>, %arg4: memref<8x128xbf16, #tpu.memory_space<vmem>>, %arg5: memref<1x128xf32, #tpu.memory_space<vmem>>, %arg6: memref<128x512xbf16, #tpu.memory_space<vmem>>, %arg7: memref<1x512xf32, #tpu.memory_space<vmem>>, %arg8: memref<8x128xf32, #tpu.memory_space<vmem>>, %arg9: memref<8x128xf32, #tpu.memory_space<vmem>>) attributes {dimension_semantics = [#tpu.dimension_semantics<parallel>], iteration_bounds = array<i64: 1>, scalar_prefetch = 0 : i64, scratch_operands = 0 : i64, tpu.core_type = #tpu.core_type<tc>, window_params = [{transform_indices = @transform_0, window_bounds = array<i64: 8, 1024>}, {transform_indices = @transform_1, window_bounds = array<i64: 8, 8>}, {pipeline_mode = #tpu.pipeline_mode<synchronous>, transform_indices = @transform_2, window_bounds = array<i64: 1024, 128>}, {pipeline_mode = #tpu.pipeline_mode<synchronous>, transform_indices = @transform_3, window_bounds = array<i64: 8, 128>}, {pipeline_mode = #tpu.pipeline_mode<synchronous>, transform_indices = @transform_4, window_bounds = array<i64: 1, 128>}, {pipeline_mode = #tpu.pipeline_mode<synchronous>, transform_indices = @transform_5, window_bounds = array<i64: 128, 512>}, {pipeline_mode = #tpu.pipeline_mode<synchronous>, transform_indices = @transform_6, window_bounds = array<i64: 1, 512>}, {transform_indices = @transform_7, window_bounds = array<i64: 8, 128>}, {transform_indices = @transform_8, window_bounds = array<i64: 8, 128>}]} {
    %c0 = arith.constant 0 : index
    %c0_0 = arith.constant 0 : index
    %0 = vector.load %arg1[%c0, %c0_0] : memref<8x1024xbf16, #tpu.memory_space<vmem>>, vector<8x1024xbf16>
    %c0_1 = arith.constant 0 : index
    %c0_2 = arith.constant 0 : index
    %1 = vector.load %arg3[%c0_1, %c0_2] : memref<1024x128xbf16, #tpu.memory_space<vmem>>, vector<1024x128xbf16>
    %cst = arith.constant dense<0.000000e+00> : vector<8x128xf32>
    %2 = tpu.matmul %0, %1, %cst {dimension_numbers = #tpu.dot_dimension_numbers<[1], [0], [0], [1], [0, 0, 1, 1], [], []>} : vector<8x1024xbf16>, vector<1024x128xbf16>, vector<8x128xf32> -> vector<8x128xf32>
    %c0_3 = arith.constant 0 : index
    %c0_4 = arith.constant 0 : index
    %3 = vector.load %arg2[%c0_3, %c0_4] : memref<8x8xbf16, #tpu.memory_space<vmem>>, vector<8x8xbf16>
    %c0_5 = arith.constant 0 : index
    %c0_6 = arith.constant 0 : index
    %4 = vector.load %arg4[%c0_5, %c0_6] : memref<8x128xbf16, #tpu.memory_space<vmem>>, vector<8x128xbf16>
    %cst_7 = arith.constant dense<0.000000e+00> : vector<8x128xf32>
    %5 = tpu.matmul %3, %4, %cst_7 {dimension_numbers = #tpu.dot_dimension_numbers<[1], [0], [0], [1], [0, 0, 1, 1], [], []>} : vector<8x8xbf16>, vector<8x128xbf16>, vector<8x128xf32> -> vector<8x128xf32>
    %6 = arith.addf %2, %5 : vector<8x128xf32>
    %c0_8 = arith.constant 0 : index
    %c0_9 = arith.constant 0 : index
    %7 = vector.load %arg5[%c0_8, %c0_9] : memref<1x128xf32, #tpu.memory_space<vmem>>, vector<1x128xf32>
    %8 = vector.broadcast %7 : vector<1x128xf32> to vector<8x128xf32>
    %9 = arith.addf %6, %8 : vector<8x128xf32>
    %cst_10 = arith.constant 0.000000e+00 : f32
    %10 = vector.broadcast %cst_10 : f32 to vector<8x128xf32>
    %11 = arith.maximumf %9, %10 : vector<8x128xf32>
    %12 = arith.truncf %11 : vector<8x128xf32> to vector<8x128xbf16>
    %13 = tpu.iota {dimensions = array<i32: 1>} : vector<8x128xi32>
    %c8_i32 = arith.constant 8 : i32
    %14 = vector.broadcast %c8_i32 : i32 to vector<8x128xi32>
    %15 = arith.cmpi slt, %13, %14 : vector<8x128xi32>
    %c0_11 = arith.constant 0 : index
    %c384 = arith.constant 384 : index
    %16 = vector.load %arg6[%c0_11, %c384] : memref<128x512xbf16, #tpu.memory_space<vmem>>, vector<128x128xbf16>
    %cst_12 = arith.constant dense<0.000000e+00> : vector<8x128xf32>
    %17 = tpu.matmul %12, %16, %cst_12 {dimension_numbers = #tpu.dot_dimension_numbers<[1], [0], [0], [1], [0, 0, 1, 1], [], []>} : vector<8x128xbf16>, vector<128x128xbf16>, vector<8x128xf32> -> vector<8x128xf32>
    %c0_13 = arith.constant 0 : index
    %c384_14 = arith.constant 384 : index
    %18 = vector.load %arg7[%c0_13, %c384_14] : memref<1x512xf32, #tpu.memory_space<vmem>>, vector<1x128xf32>
    %19 = vector.broadcast %18 : vector<1x128xf32> to vector<8x128xf32>
    %20 = arith.addf %17, %19 : vector<8x128xf32>
    %cst_15 = arith.constant 0.333333343 : f32
    %21 = vector.broadcast %cst_15 : f32 to vector<8x128xf32>
    %22 = arith.mulf %20, %21 : vector<8x128xf32>
    %c0_16 = arith.constant 0 : index
    %c0_17 = arith.constant 0 : index
    %23 = vector.load %arg8[%c0_16, %c0_17] : memref<8x128xf32, #tpu.memory_space<vmem>>, vector<8x128xf32>
    tpu.vector_store %arg8[%c0_16, %c0_17], %22 {strides = array<i32>} : memref<8x128xf32, #tpu.memory_space<vmem>>, vector<8x128xf32>,
    %cst_18 = arith.constant 0.000000e+00 : f32
    %24 = vector.broadcast %cst_18 : f32 to vector<8x128xf32>
    %c0_19 = arith.constant 0 : index
    %c0_20 = arith.constant 0 : index
    %25 = vector.load %arg6[%c0_19, %c0_20] : memref<128x512xbf16, #tpu.memory_space<vmem>>, vector<128x128xbf16>
    %cst_21 = arith.constant dense<0.000000e+00> : vector<8x128xf32>
    %26 = tpu.matmul %12, %25, %cst_21 {dimension_numbers = #tpu.dot_dimension_numbers<[1], [0], [0], [1], [0, 0, 1, 1], [], []>} : vector<8x128xbf16>, vector<128x128xbf16>, vector<8x128xf32> -> vector<8x128xf32>
    %c0_22 = arith.constant 0 : index
    %c0_23 = arith.constant 0 : index
    %27 = vector.load %arg7[%c0_22, %c0_23] : memref<1x512xf32, #tpu.memory_space<vmem>>, vector<1x128xf32>
    %28 = vector.broadcast %27 : vector<1x128xf32> to vector<8x128xf32>
    %29 = arith.addf %26, %28 : vector<8x128xf32>
    %cst_24 = arith.constant -1.000000e+30 : f32
    %30 = vector.broadcast %cst_24 : f32 to vector<8x128xf32>
    %31 = arith.select %15, %29, %30 : vector<8x128xi1>, vector<8x128xf32>
    %cst_25 = arith.constant dense<0xFF800000> : vector<8xf32>
    %32 = vector.multi_reduction <maximumf>, %31, %cst_25 [1] : vector<8x128xf32> to vector<8xf32>
    %33 = vector.shape_cast %32 : vector<8xf32> to vector<8x1xf32>
    %34 = vector.broadcast %33 : vector<8x1xf32> to vector<8x128xf32>
    %35 = arith.subf %31, %34 : vector<8x128xf32>
    %36 = math.exp %35 : vector<8x128xf32>
    %cst_26 = arith.constant dense<0.000000e+00> : vector<8xf32>
    %37 = vector.multi_reduction <add>, %36, %cst_26 [1] : vector<8x128xf32> to vector<8xf32>
    %38 = vector.shape_cast %37 : vector<8xf32> to vector<8x1xf32>
    %39 = tpu.reciprocal %38 {approx = true} : vector<8x1xf32> -> vector<8x1xf32>
    %40 = vector.broadcast %39 : vector<8x1xf32> to vector<8x128xf32>
    %41 = arith.mulf %36, %40 : vector<8x128xf32>
    %42 = arith.addf %24, %41 : vector<8x128xf32>
    %c0_27 = arith.constant 0 : index
    %c128 = arith.constant 128 : index
    %43 = vector.load %arg6[%c0_27, %c128] : memref<128x512xbf16, #tpu.memory_space<vmem>>, vector<128x128xbf16>
    %cst_28 = arith.constant dense<0.000000e+00> : vector<8x128xf32>
    %44 = tpu.matmul %12, %43, %cst_28 {dimension_numbers = #tpu.dot_dimension_numbers<[1], [0], [0], [1], [0, 0, 1, 1], [], []>} : vector<8x128xbf16>, vector<128x128xbf16>, vector<8x128xf32> -> vector<8x128xf32>
    %c0_29 = arith.constant 0 : index
    %c128_30 = arith.constant 128 : index
    %45 = vector.load %arg7[%c0_29, %c128_30] : memref<1x512xf32, #tpu.memory_space<vmem>>, vector<1x128xf32>
    %46 = vector.broadcast %45 : vector<1x128xf32> to vector<8x128xf32>
    %47 = arith.addf %44, %46 : vector<8x128xf32>
    %cst_31 = arith.constant -1.000000e+30 : f32
    %48 = vector.broadcast %cst_31 : f32 to vector<8x128xf32>
    %49 = arith.select %15, %47, %48 : vector<8x128xi1>, vector<8x128xf32>
    %cst_32 = arith.constant dense<0xFF800000> : vector<8xf32>
    %50 = vector.multi_reduction <maximumf>, %49, %cst_32 [1] : vector<8x128xf32> to vector<8xf32>
    %51 = vector.shape_cast %50 : vector<8xf32> to vector<8x1xf32>
    %52 = vector.broadcast %51 : vector<8x1xf32> to vector<8x128xf32>
    %53 = arith.subf %49, %52 : vector<8x128xf32>
    %54 = math.exp %53 : vector<8x128xf32>
    %cst_33 = arith.constant dense<0.000000e+00> : vector<8xf32>
    %55 = vector.multi_reduction <add>, %54, %cst_33 [1] : vector<8x128xf32> to vector<8xf32>
    %56 = vector.shape_cast %55 : vector<8xf32> to vector<8x1xf32>
    %57 = tpu.reciprocal %56 {approx = true} : vector<8x1xf32> -> vector<8x1xf32>
    %58 = vector.broadcast %57 : vector<8x1xf32> to vector<8x128xf32>
    %59 = arith.mulf %54, %58 : vector<8x128xf32>
    %60 = arith.addf %42, %59 : vector<8x128xf32>
    %c0_34 = arith.constant 0 : index
    %c256 = arith.constant 256 : index
    %61 = vector.load %arg6[%c0_34, %c256] : memref<128x512xbf16, #tpu.memory_space<vmem>>, vector<128x128xbf16>
    %cst_35 = arith.constant dense<0.000000e+00> : vector<8x128xf32>
    %62 = tpu.matmul %12, %61, %cst_35 {dimension_numbers = #tpu.dot_dimension_numbers<[1], [0], [0], [1], [0, 0, 1, 1], [], []>} : vector<8x128xbf16>, vector<128x128xbf16>, vector<8x128xf32> -> vector<8x128xf32>
    %c0_36 = arith.constant 0 : index
    %c256_37 = arith.constant 256 : index
    %63 = vector.load %arg7[%c0_36, %c256_37] : memref<1x512xf32, #tpu.memory_space<vmem>>, vector<1x128xf32>
    %64 = vector.broadcast %63 : vector<1x128xf32> to vector<8x128xf32>
    %65 = arith.addf %62, %64 : vector<8x128xf32>
    %cst_38 = arith.constant -1.000000e+30 : f32
    %66 = vector.broadcast %cst_38 : f32 to vector<8x128xf32>
    %67 = arith.select %15, %65, %66 : vector<8x128xi1>, vector<8x128xf32>
    %cst_39 = arith.constant dense<0xFF800000> : vector<8xf32>
    %68 = vector.multi_reduction <maximumf>, %67, %cst_39 [1] : vector<8x128xf32> to vector<8xf32>
    %69 = vector.shape_cast %68 : vector<8xf32> to vector<8x1xf32>
    %70 = vector.broadcast %69 : vector<8x1xf32> to vector<8x128xf32>
    %71 = arith.subf %67, %70 : vector<8x128xf32>
    %72 = math.exp %71 : vector<8x128xf32>
    %cst_40 = arith.constant dense<0.000000e+00> : vector<8xf32>
    %73 = vector.multi_reduction <add>, %72, %cst_40 [1] : vector<8x128xf32> to vector<8xf32>
    %74 = vector.shape_cast %73 : vector<8xf32> to vector<8x1xf32>
    %75 = tpu.reciprocal %74 {approx = true} : vector<8x1xf32> -> vector<8x1xf32>
    %76 = vector.broadcast %75 : vector<8x1xf32> to vector<8x128xf32>
    %77 = arith.mulf %72, %76 : vector<8x128xf32>
    %78 = arith.addf %60, %77 : vector<8x128xf32>
    %cst_41 = arith.constant 0.333333343 : f32
    %79 = vector.broadcast %cst_41 : f32 to vector<8x128xf32>
    %80 = arith.mulf %78, %79 : vector<8x128xf32>
    %c0_42 = arith.constant 0 : index
    %c0_43 = arith.constant 0 : index
    %81 = vector.load %arg9[%c0_42, %c0_43] : memref<8x128xf32, #tpu.memory_space<vmem>>, vector<8x128xf32>
    tpu.vector_store %arg9[%c0_42, %c0_43], %80 {strides = array<i32>} : memref<8x128xf32, #tpu.memory_space<vmem>>, vector<8x128xf32>,
    return
  }
  func.func @transform_0(%arg0: i32) -> (i32, i32) {
    %c0_i32 = arith.constant 0 : i32
    %c0_i32_0 = arith.constant 0 : i32
    return %arg0, %c0_i32 : i32, i32
  }
  func.func @transform_1(%arg0: i32) -> (i32, i32) {
    %c0_i32 = arith.constant 0 : i32
    %c0_i32_0 = arith.constant 0 : i32
    return %arg0, %c0_i32 : i32, i32
  }
  func.func @transform_2(%arg0: i32) -> (i32, i32) {
    %c0_i32 = arith.constant 0 : i32
    %c0_i32_0 = arith.constant 0 : i32
    %c0_i32_1 = arith.constant 0 : i32
    return %c0_i32, %c0_i32_0 : i32, i32
  }
  func.func @transform_3(%arg0: i32) -> (i32, i32) {
    %c0_i32 = arith.constant 0 : i32
    %c0_i32_0 = arith.constant 0 : i32
    %c0_i32_1 = arith.constant 0 : i32
    return %c0_i32, %c0_i32_0 : i32, i32
  }
  func.func @transform_4(%arg0: i32) -> (i32, i32) {
    %c0_i32 = arith.constant 0 : i32
    %c0_i32_0 = arith.constant 0 : i32
    %c0_i32_1 = arith.constant 0 : i32
    return %c0_i32, %c0_i32_0 : i32, i32
  }
  func.func @transform_5(%arg0: i32) -> (i32, i32) {
    %c0_i32 = arith.constant 0 : i32
    %c0_i32_0 = arith.constant 0 : i32
    %c0_i32_1 = arith.constant 0 : i32
    return %c0_i32, %c0_i32_0 : i32, i32
  }
  func.func @transform_6(%arg0: i32) -> (i32, i32) {
    %c0_i32 = arith.constant 0 : i32
    %c0_i32_0 = arith.constant 0 : i32
    %c0_i32_1 = arith.constant 0 : i32
    return %c0_i32, %c0_i32_0 : i32, i32
  }
  func.func @transform_7(%arg0: i32) -> (i32, i32) {
    %c0_i32 = arith.constant 0 : i32
    %c0_i32_0 = arith.constant 0 : i32
    return %arg0, %c0_i32 : i32, i32
  }
  func.func @transform_8(%arg0: i32) -> (i32, i32) {
    %c0_i32 = arith.constant 0 : i32
    %c0_i32_0 = arith.constant 0 : i32
    return %arg0, %c0_i32 : i32, i32
  }
}

</mosaic_0001>

<llo_original>
// kernel: tpu_custom_call.1
$region0: #{tpu_custom_call.1}
  #allocation0 [shape = 'u32[]', space=smem, size = 0x4, offset = 0x4, fixed_abs, tag = 'smem constant byte address 0x4 - core index']
  #allocation1 [shape = 'u32[144,128]{1,0:T(1,128)}', space=vmem, size = 0x12000, scoped, tag = 'internal scratch']
  %s0 = inlined_call_operand.hbm [shape: bf16[8,1024], index: 0, kind: input, shape index: {}]
  %s1 = inlined_call_operand.hbm [shape: bf16[8,8], index: 1, kind: input, shape index: {}]
  %s2 = inlined_call_operand.hbm [shape: bf16[1024,128], index: 2, kind: input, shape index: {}]
  %s3 = inlined_call_operand.vmem [shape: bf16[8,128], index: 3, kind: input, shape index: {}]
  %s4 = inlined_call_operand.vmem [shape: f32[1,128], index: 4, kind: input, shape index: {}]
  %s5 = inlined_call_operand.hbm [shape: bf16[128,512], index: 5, kind: input, shape index: {}]
  %s6 = inlined_call_operand.vmem [shape: f32[1,512], index: 6, kind: input, shape index: {}]
  %s7 = inlined_call_operand.hbm [shape: f32[8,128], index: 7, kind: output, shape index: {0}]
  %s8 = inlined_call_operand.hbm [shape: f32[8,128], index: 8, kind: output, shape index: {1}]
  %9 = xla_tuple %s7, %s8
  %s10 = sld [smem:[#allocation0]]
  $region62: #{tpu_custom_call.1} parent=0
    _
  %s12 = ssub.s32 1, %s10
  %s13 = scalar_select 0, %s12, %s10
  $region1: #{tpu_custom_call.1} parent=0
    #allocation2 [shape = 'u8[16384]{0}', space=vmem, size = 0x4000, scoped, tag = 'input window, operand 0, single buffered']
    #allocation3 [shape = 's32[1]{0}', space=sflag, size = 0x4, scoped, tag = 'scoped memory for tpu_custom_call.1']
    #allocation4 [shape = 's32[1]{0}', space=sflag, size = 0x4, scoped, tag = 'scoped memory for tpu_custom_call.1']
    #allocation5 [shape = 'u8[2048]{0}', space=vmem, size = 0x800, scoped, tag = 'input window, operand 1, single buffered']
    #allocation6 [shape = 's32[1]{0}', space=sflag, size = 0x4, scoped, tag = 'scoped memory for tpu_custom_call.1']
    #allocation7 [shape = 'u8[262144]{0}', space=vmem, size = 0x40000, scoped, tag = 'input window, operand 2, single buffered']
    #allocation8 [shape = 'u8[131072]{0}', space=vmem, size = 0x20000, scoped, tag = 'input window, operand 5, single buffered']
    #allocation9 [shape = 's32[1]{0}', space=sflag, size = 0x4, scoped, tag = 'scoped memory for tpu_custom_call.1']
    #allocation10 [shape = 'u8[4096]{0}', space=vmem, size = 0x1000, scoped, tag = 'output window, operand 0, single buffered']
    #allocation11 [shape = 'u8[4096]{0}', space=vmem, size = 0x1000, scoped, tag = 'output window, operand 1, single buffered']
    #allocation12 [shape = 's32[1]{0}', space=sflag, size = 0x4, scoped, tag = 'scoped memory for tpu_custom_call.1']
    %14 = vsyncpa [#allocation3], 0
    %15 = vsyncpa [#allocation6], 0
    %16 = vsyncpa [#allocation9], 0
    %17 = vsyncpa [#allocation4], 0
    %18 = vsyncpa [#allocation12], 0
    // Predicated region
    $region2: #{tpu_custom_call.1} parent=1 // pred_check
      _
    $region3: #{tpu_custom_call.1} parent=1 // pred_check_branch
      %20 = sbr.rel (0) target = $region5
    $region4: #{tpu_custom_call.1} parent=1 // pred_region
      %s22 = ssub.s32 512, 512
      %23 = vsyncadd [#allocation3], %s22
      %s25 = sshll.u32 [#allocation2], 4
      %s26 = int_to_ptr.vmem [resolvable:$true] %s25
      %28 = dma.hbm_to_vmem [thread:$0]  %s0, 512, %s26, [#allocation3]
    $region5: #{tpu_custom_call.1} parent=1 // pred_fallthru
      _
    // Predicated region
    $region6: #{tpu_custom_call.1} parent=1 // pred_check
      _
    $region7: #{tpu_custom_call.1} parent=1 // pred_check_branch
      %30 = sbr.rel (0) target = $region9
    $region8: #{tpu_custom_call.1} parent=1 // pred_region
      %s32 = ssub.s32 64, 64
      %33 = vsyncadd [#allocation6], %s32
      %s35 = sshll.u32 [#allocation5], 4
      %s36 = int_to_ptr.vmem [resolvable:$true] %s35
      %38 = dma.hbm_to_vmem [thread:$0]  %s1, 64, %s36, [#allocation6]
    $region9: #{tpu_custom_call.1} parent=1 // pred_fallthru
      _
    // Predicated region
    $region10: #{tpu_custom_call.1} parent=1 // pred_check
      _
    $region11: #{tpu_custom_call.1} parent=1 // pred_check_branch
      %40 = sbr.rel (0) target = $region13
    $region12: #{tpu_custom_call.1} parent=1 // pred_region
      %s42 = ssub.s32 8192, 8192
      %43 = vsyncadd [#allocation6], %s42
      %s44 = sshll.u32 [#allocation7], 4
      %s45 = int_to_ptr.vmem [resolvable:$true] %s44
      %50 = dma.hbm_to_vmem [thread:$0]  %s2, 8192, %s45, [#allocation6], 64, 64, 4
    $region13: #{tpu_custom_call.1} parent=1 // pred_fallthru
      _
    // Predicated region
    $region14: #{tpu_custom_call.1} parent=1 // pred_check
      _
    $region15: #{tpu_custom_call.1} parent=1 // pred_check_branch
      %52 = sbr.rel (0) target = $region17
    $region16: #{tpu_custom_call.1} parent=1 // pred_region
      _
    $region17: #{tpu_custom_call.1} parent=1 // pred_fallthru
      _
    // Predicated region
    $region18: #{tpu_custom_call.1} parent=1 // pred_check
      _
    $region19: #{tpu_custom_call.1} parent=1 // pred_check_branch
      %54 = sbr.rel (0) target = $region21
    $region20: #{tpu_custom_call.1} parent=1 // pred_region
      _
    $region21: #{tpu_custom_call.1} parent=1 // pred_fallthru
      _
    // Predicated region
    $region22: #{tpu_custom_call.1} parent=1 // pred_check
      _
    $region23: #{tpu_custom_call.1} parent=1 // pred_check_branch
      %56 = sbr.rel (0) target = $region25
    $region24: #{tpu_custom_call.1} parent=1 // pred_region
      %s58 = ssub.s32 4096, 4096
      %59 = vsyncadd [#allocation9], %s58
      %s60 = sshll.u32 [#allocation8], 4
      %s61 = int_to_ptr.vmem [resolvable:$true] %s60
      %66 = dma.hbm_to_vmem [thread:$0]  %s5, 4096, %s61, [#allocation9], 256, 256, 16
    $region25: #{tpu_custom_call.1} parent=1 // pred_fallthru
      _
    // Predicated region
    $region26: #{tpu_custom_call.1} parent=1 // pred_check
      _
    $region27: #{tpu_custom_call.1} parent=1 // pred_check_branch
      %68 = sbr.rel (0) target = $region29
    $region28: #{tpu_custom_call.1} parent=1 // pred_region
      _
    $region29: #{tpu_custom_call.1} parent=1 // pred_fallthru
      _
    // Predicated region
    $region30: #{tpu_custom_call.1} parent=1 // pred_check
      _
    $region31: #{tpu_custom_call.1} parent=1 // pred_check_branch
      %70 = sbr.rel (0) target = $region33
    $region32: #{tpu_custom_call.1} parent=1 // pred_region
      %71 = dma.done [#allocation3], 512
    $region33: #{tpu_custom_call.1} parent=1 // pred_fallthru
      _
    // Predicated region
    $region34: #{tpu_custom_call.1} parent=1 // pred_check
      _
    $region35: #{tpu_custom_call.1} parent=1 // pred_check_branch
      %73 = sbr.rel (0) target = $region37
    $region36: #{tpu_custom_call.1} parent=1 // pred_region
      %74 = dma.done [#allocation6], 64
    $region37: #{tpu_custom_call.1} parent=1 // pred_fallthru
      _
    // Predicated region
    $region38: #{tpu_custom_call.1} parent=1 // pred_check
      _
    $region39: #{tpu_custom_call.1} parent=1 // pred_check_branch
      %76 = sbr.rel (0) target = $region41
    $region40: #{tpu_custom_call.1} parent=1 // pred_region
      %77 = dma.done [#allocation6], 8192
    $region41: #{tpu_custom_call.1} parent=1 // pred_fallthru
      _
    // Predicated region
    $region42: #{tpu_custom_call.1} parent=1 // pred_check
      _
    $region43: #{tpu_custom_call.1} parent=1 // pred_check_branch
      %79 = sbr.rel (0) target = $region45
    $region44: #{tpu_custom_call.1} parent=1 // pred_region
      %80 = dma.done [#allocation9], 4096
    $region45: #{tpu_custom_call.1} parent=1 // pred_fallthru
      _
    %v82 = vld [vmem:[#allocation2] sm:$0xff]
    %v83 = vld [vmem:[#allocation2 + $0x8] sm:$0xff]
    %v84 = vld [vmem:[#allocation2 + $0x10] sm:$0xff]
    %v85 = vld [vmem:[#allocation2 + $0x18] sm:$0xff]
    %v86 = vld [vmem:[#allocation7] sm:$0xf]
    %v87 = vld [vmem:[#allocation7 + $0x4] sm:$0xf]
    %v88 = vld [vmem:[#allocation7 + $0x8] sm:$0xf]
    %v89 = vld [vmem:[#allocation7 + $0xc] sm:$0xf]
    %v90 = vld [vmem:[#allocation7 + $0x10] sm:$0xf]
    %v91 = vld [vmem:[#allocation7 + $0x14] sm:$0xf]
    %v92 = vld [vmem:[#allocation7 + $0x18] sm:$0xf]
    %v93 = vld [vmem:[#allocation7 + $0x1c] sm:$0xf]
    %v94 = vld [vmem:[#allocation7 + $0x20] sm:$0xf]
    %v95 = vld [vmem:[#allocation7 + $0x24] sm:$0xf]
    %v96 = vld [vmem:[#allocation7 + $0x28] sm:$0xf]
    %v97 = vld [vmem:[#allocation7 + $0x2c] sm:$0xf]
    %v98 = vld [vmem:[#allocation7 + $0x30] sm:$0xf]
    %v99 = vld [vmem:[#allocation7 + $0x34] sm:$0xf]
    %v100 = vld [vmem:[#allocation7 + $0x38] sm:$0xf]
    %v101 = vld [vmem:[#allocation7 + $0x3c] sm:$0xf]
    %v102 = vld [vmem:[#allocation7 + $0x40] sm:$0xf]
    %v103 = vld [vmem:[#allocation7 + $0x44] sm:$0xf]
    %v104 = vld [vmem:[#allocation7 + $0x48] sm:$0xf]
    %v105 = vld [vmem:[#allocation7 + $0x4c] sm:$0xf]
    %v106 = vld [vmem:[#allocation7 + $0x50] sm:$0xf]
    %v107 = vld [vmem:[#allocation7 + $0x54] sm:$0xf]
    %v108 = vld [vmem:[#allocation7 + $0x58] sm:$0xf]
    %v109 = vld [vmem:[#allocation7 + $0x5c] sm:$0xf]
    %v110 = vld [vmem:[#allocation7 + $0x60] sm:$0xf]
    %v111 = vld [vmem:[#allocation7 + $0x64] sm:$0xf]
    %v112 = vld [vmem:[#allocation7 + $0x68] sm:$0xf]
    %v113 = vld [vmem:[#allocation7 + $0x6c] sm:$0xf]
    %v114 = vld [vmem:[#allocation7 + $0x70] sm:$0xf]
    %v115 = vld [vmem:[#allocation7 + $0x74] sm:$0xf]
    %v116 = vld [vmem:[#allocation7 + $0x78] sm:$0xf]
    %v117 = vld [vmem:[#allocation7 + $0x7c] sm:$0xf]
    %v118 = vld [vmem:[#allocation7 + $0x80] sm:$0xf]
    %v119 = vld [vmem:[#allocation7 + $0x84] sm:$0xf]
    %v120 = vld [vmem:[#allocation7 + $0x88] sm:$0xf]
    %v121 = vld [vmem:[#allocation7 + $0x8c] sm:$0xf]
    %v122 = vld [vmem:[#allocation7 + $0x90] sm:$0xf]
    %v123 = vld [vmem:[#allocation7 + $0x94] sm:$0xf]
    %v124 = vld [vmem:[#allocation7 + $0x98] sm:$0xf]
    %v125 = vld [vmem:[#allocation7 + $0x9c] sm:$0xf]
    %v126 = vld [vmem:[#allocation7 + $0xa0] sm:$0xf]
    %v127 = vld [vmem:[#allocation7 + $0xa4] sm:$0xf]
    %v128 = vld [vmem:[#allocation7 + $0xa8] sm:$0xf]
    %v129 = vld [vmem:[#allocation7 + $0xac] sm:$0xf]
    %v130 = vld [vmem:[#allocation7 + $0xb0] sm:$0xf]
    %v131 = vld [vmem:[#allocation7 + $0xb4] sm:$0xf]
    %v132 = vld [vmem:[#allocation7 + $0xb8] sm:$0xf]
    %v133 = vld [vmem:[#allocation7 + $0xbc] sm:$0xf]
    %v134 = vld [vmem:[#allocation7 + $0xc0] sm:$0xf]
    %v135 = vld [vmem:[#allocation7 + $0xc4] sm:$0xf]
    %v136 = vld [vmem:[#allocation7 + $0xc8] sm:$0xf]
    %v137 = vld [vmem:[#allocation7 + $0xcc] sm:$0xf]
    %v138 = vld [vmem:[#allocation7 + $0xd0] sm:$0xf]
    %v139 = vld [vmem:[#allocation7 + $0xd4] sm:$0xf]
    %v140 = vld [vmem:[#allocation7 + $0xd8] sm:$0xf]
    %v141 = vld [vmem:[#allocation7 + $0xdc] sm:$0xf]
    %v142 = vld [vmem:[#allocation7 + $0xe0] sm:$0xf]
    %v143 = vld [vmem:[#allocation7 + $0xe4] sm:$0xf]
    %v144 = vld [vmem:[#allocation7 + $0xe8] sm:$0xf]
    %v145 = vld [vmem:[#allocation7 + $0xec] sm:$0xf]
    %v146 = vld [vmem:[#allocation7 + $0xf0] sm:$0xf]
    %v147 = vld [vmem:[#allocation7 + $0xf4] sm:$0xf]
    %v148 = vld [vmem:[#allocation7 + $0xf8] sm:$0xf]
    %v149 = vld [vmem:[#allocation7 + $0xfc] sm:$0xf]
    %v150 = vld [vmem:[#allocation7 + $0x100] sm:$0xf]
    %v151 = vld [vmem:[#allocation7 + $0x104] sm:$0xf]
    %v152 = vld [vmem:[#allocation7 + $0x108] sm:$0xf]
    %v153 = vld [vmem:[#allocation7 + $0x10c] sm:$0xf]
    %v154 = vld [vmem:[#allocation7 + $0x110] sm:$0xf]
    %v155 = vld [vmem:[#allocation7 + $0x114] sm:$0xf]
    %v156 = vld [vmem:[#allocation7 + $0x118] sm:$0xf]
    %v157 = vld [vmem:[#allocation7 + $0x11c] sm:$0xf]
    %v158 = vld [vmem:[#allocation7 + $0x120] sm:$0xf]
    %v159 = vld [vmem:[#allocation7 + $0x124] sm:$0xf]
    %v160 = vld [vmem:[#allocation7 + $0x128] sm:$0xf]
    %v161 = vld [vmem:[#allocation7 + $0x12c] sm:$0xf]
    %v162 = vld [vmem:[#allocation7 + $0x130] sm:$0xf]
    %v163 = vld [vmem:[#allocation7 + $0x134] sm:$0xf]
    %v164 = vld [vmem:[#allocation7 + $0x138] sm:$0xf]
    %v165 = vld [vmem:[#allocation7 + $0x13c] sm:$0xf]
    %v166 = vld [vmem:[#allocation7 + $0x140] sm:$0xf]
    %v167 = vld [vmem:[#allocation7 + $0x144] sm:$0xf]
    %v168 = vld [vmem:[#allocation7 + $0x148] sm:$0xf]
    %v169 = vld [vmem:[#allocation7 + $0x14c] sm:$0xf]
    %v170 = vld [vmem:[#allocation7 + $0x150] sm:$0xf]
    %v171 = vld [vmem:[#allocation7 + $0x154] sm:$0xf]
    %v172 = vld [vmem:[#allocation7 + $0x158] sm:$0xf]
    %v173 = vld [vmem:[#allocation7 + $0x15c] sm:$0xf]
    %v174 = vld [vmem:[#allocation7 + $0x160] sm:$0xf]
    %v175 = vld [vmem:[#allocation7 + $0x164] sm:$0xf]
    %v176 = vld [vmem:[#allocation7 + $0x168] sm:$0xf]
    %v177 = vld [vmem:[#allocation7 + $0x16c] sm:$0xf]
    %v178 = vld [vmem:[#allocation7 + $0x170] sm:$0xf]
    %v179 = vld [vmem:[#allocation7 + $0x174] sm:$0xf]
    %v180 = vld [vmem:[#allocation7 + $0x178] sm:$0xf]
    %v181 = vld [vmem:[#allocation7 + $0x17c] sm:$0xf]
    %v182 = vld [vmem:[#allocation7 + $0x180] sm:$0xf]
    %v183 = vld [vmem:[#allocation7 + $0x184] sm:$0xf]
    %v184 = vld [vmem:[#allocation7 + $0x188] sm:$0xf]
    %v185 = vld [vmem:[#allocation7 + $0x18c] sm:$0xf]
    %v186 = vld [vmem:[#allocation7 + $0x190] sm:$0xf]
    %v187 = vld [vmem:[#allocation7 + $0x194] sm:$0xf]
    %v188 = vld [vmem:[#allocation7 + $0x198] sm:$0xf]
    %v189 = vld [vmem:[#allocation7 + $0x19c] sm:$0xf]
    %v190 = vld [vmem:[#allocation7 + $0x1a0] sm:$0xf]
    %v191 = vld [vmem:[#allocation7 + $0x1a4] sm:$0xf]
    %v192 = vld [vmem:[#allocation7 + $0x1a8] sm:$0xf]
    %v193 = vld [vmem:[#allocation7 + $0x1ac] sm:$0xf]
    %v194 = vld [vmem:[#allocation7 + $0x1b0] sm:$0xf]
    %v195 = vld [vmem:[#allocation7 + $0x1b4] sm:$0xf]
    %v196 = vld [vmem:[#allocation7 + $0x1b8] sm:$0xf]
    %v197 = vld [vmem:[#allocation7 + $0x1bc] sm:$0xf]
    %v198 = vld [vmem:[#allocation7 + $0x1c0] sm:$0xf]
    %v199 = vld [vmem:[#allocation7 + $0x1c4] sm:$0xf]
    %v200 = vld [vmem:[#allocation7 + $0x1c8] sm:$0xf]
    %v201 = vld [vmem:[#allocation7 + $0x1cc] sm:$0xf]
    %v202 = vld [vmem:[#allocation7 + $0x1d0] sm:$0xf]
    %v203 = vld [vmem:[#allocation7 + $0x1d4] sm:$0xf]
    %v204 = vld [vmem:[#allocation7 + $0x1d8] sm:$0xf]
    %v205 = vld [vmem:[#allocation7 + $0x1dc] sm:$0xf]
    %v206 = vld [vmem:[#allocation7 + $0x1e0] sm:$0xf]
    %v207 = vld [vmem:[#allocation7 + $0x1e4] sm:$0xf]
    %v208 = vld [vmem:[#allocation7 + $0x1e8] sm:$0xf]
    %v209 = vld [vmem:[#allocation7 + $0x1ec] sm:$0xf]
    %v210 = vld [vmem:[#allocation7 + $0x1f0] sm:$0xf]
    %v211 = vld [vmem:[#allocation7 + $0x1f4] sm:$0xf]
    %v212 = vld [vmem:[#allocation7 + $0x1f8] sm:$0xf]
    %v213 = vld [vmem:[#allocation7 + $0x1fc] sm:$0xf]
    %v214 = vld [vmem:[#allocation5] sm:$0xf]
    %v215 = vld [vmem:[%s3] sm:$0xf]
    %vm216 = vcmask 64512
    %v218 = vsel %vm216, %v214, 0
    %vm220 = vcmask 1043456
    %v222 = vsel %vm220, %v215, 0
    %224 = vmatprep.subr.bf16.mxu0 0
    %225 = vmatpush1.bf16.msra.mxu0 %v222
    %226 = vmatprep.subr.bf16.mxu0 0
    %227 = vmatpush1.bf16.msra.mxu0 0
    %228 = vmatprep.subr.bf16.mxu0 0
    %229 = vmatpush1.bf16.msra.mxu0 0
    %230 = vmatprep.subr.bf16.mxu0 0
    %231 = vmatpush1.bf16.msra.mxu0 0
    %232 = vmatprep.subr.bf16.mxu0 0
    %233 = vmatpush1.bf16.msra.mxu0 0
    %234 = vmatprep.subr.bf16.mxu0 0
    %235 = vmatpush1.bf16.msra.mxu0 0
    %236 = vmatprep.subr.bf16.mxu0 0
    %237 = vmatpush1.bf16.msra.mxu0 0
    %238 = vmatprep.subr.bf16.mxu0 0
    %239 = vmatpush1.bf16.msra.mxu0 0
    %240 = vmatprep.subr.bf16.mxu0 0
    %241 = vmatpush1.bf16.msra.mxu0 0
    %242 = vmatprep.subr.bf16.mxu0 0
    %243 = vmatpush1.bf16.msra.mxu0 0
    %244 = vmatprep.subr.bf16.mxu0 0
    %245 = vmatpush1.bf16.msra.mxu0 0
    %246 = vmatprep.subr.bf16.mxu0 0
    %247 = vmatpush1.bf16.msra.mxu0 0
    %248 = vmatprep.subr.bf16.mxu0 0
    %249 = vmatpush1.bf16.msra.mxu0 0
    %250 = vmatprep.subr.bf16.mxu0 0
    %251 = vmatpush1.bf16.msra.mxu0 0
    %252 = vmatprep.subr.bf16.mxu0 0
    %253 = vmatpush1.bf16.msra.mxu0 0
    %254 = vmatprep.subr.bf16.mxu0 0
    %255 = vmatpush1.bf16.msra.mxu0 0
    %256 = vmatprep.mubr.bf16.mxu0 0
    %257 = vmatmul.mubr.bf16.gmra.mrb[0].mxu0 %v218
    %v258 = vpop.f32.mrb[0].mxu0
    %v259 = vadd.f32 0.0, %v258
    %v260 = vpop.f32.mrb[0].mxu0
    %v261 = vpop.f32.mrb[0].mxu0
    %v262 = vpop.f32.mrb[0].mxu0
    %263 = vdwg.mxu0
    %v268 = vunpack.c.l.b16 %v82
    %v269 = vunpack.c.h.b16 %v82
    %v270 = vunpack.c.l.b16 %v83
    %v271 = vunpack.c.h.b16 %v83
    %v272 = vunpack.c.l.b16 %v84
    %v273 = vunpack.c.h.b16 %v84
    %v274 = vunpack.c.l.b16 %v85
    %v275 = vunpack.c.h.b16 %v85
    %v276 = vpack.c.b16 %v268, %v268
    %v277 = vpack.c.b16 %v269, %v269
    %v278 = vpack.c.b16 %v270, %v270
    %v279 = vpack.c.b16 %v271, %v271
    %v280 = vpack.c.b16 %v272, %v272
    %v281 = vpack.c.b16 %v273, %v273
    %v282 = vpack.c.b16 %v274, %v274
    %v283 = vpack.c.b16 %v275, %v275
    %v420 = vunpack.c.l.b16 %v86
    %v421 = vunpack.c.l.b16 %v87
    %v422 = vunpack.c.l.b16 %v88
    %v423 = vunpack.c.l.b16 %v89
    %v424 = vunpack.c.l.b16 %v90
    %v425 = vunpack.c.l.b16 %v91
    %v426 = vunpack.c.l.b16 %v92
    %v427 = vunpack.c.l.b16 %v93
    %v428 = vunpack.c.l.b16 %v94
    %v429 = vunpack.c.l.b16 %v95
    %v430 = vunpack.c.l.b16 %v96
    %v431 = vunpack.c.l.b16 %v97
    %v432 = vunpack.c.l.b16 %v98
    %v433 = vunpack.c.l.b16 %v99
    %v434 = vunpack.c.l.b16 %v100
    %v435 = vunpack.c.l.b16 %v101
    %v436 = vunpack.c.l.b16 %v102
    %v437 = vunpack.c.l.b16 %v103
    %v438 = vunpack.c.l.b16 %v104
    %v439 = vunpack.c.l.b16 %v105
    %v440 = vunpack.c.l.b16 %v106
    %v441 = vunpack.c.l.b16 %v107
    %v442 = vunpack.c.l.b16 %v108
    %v443 = vunpack.c.l.b16 %v109
    %v444 = vunpack.c.l.b16 %v110
    %v445 = vunpack.c.l.b16 %v111
    %v446 = vunpack.c.l.b16 %v112
    %v447 = vunpack.c.l.b16 %v113
    %v448 = vunpack.c.l.b16 %v114
    %v449 = vunpack.c.l.b16 %v115
    %v450 = vunpack.c.l.b16 %v116
    %v451 = vunpack.c.l.b16 %v117
    %v452 = vunpack.c.l.b16 %v118
    %v453 = vunpack.c.l.b16 %v119
    %v454 = vunpack.c.l.b16 %v120
    %v455 = vunpack.c.l.b16 %v121
    %v456 = vunpack.c.l.b16 %v122
    %v457 = vunpack.c.l.b16 %v123
    %v458 = vunpack.c.l.b16 %v124
    %v459 = vunpack.c.l.b16 %v125
    %v460 = vunpack.c.l.b16 %v126
    %v461 = vunpack.c.l.b16 %v127
    %v462 = vunpack.c.l.b16 %v128
    %v463 = vunpack.c.l.b16 %v129
    %v464 = vunpack.c.l.b16 %v130
    %v465 = vunpack.c.l.b16 %v131
    %v466 = vunpack.c.l.b16 %v132
    %v467 = vunpack.c.l.b16 %v133
    %v468 = vunpack.c.l.b16 %v134
    %v469 = vunpack.c.l.b16 %v135
    %v470 = vunpack.c.l.b16 %v136
    %v471 = vunpack.c.l.b16 %v137
    %v472 = vunpack.c.l.b16 %v138
    %v473 = vunpack.c.l.b16 %v139
    %v474 = vunpack.c.l.b16 %v140
    %v475 = vunpack.c.l.b16 %v141
    %v476 = vunpack.c.l.b16 %v142
    %v477 = vunpack.c.l.b16 %v143
    %v478 = vunpack.c.l.b16 %v144
    %v479 = vunpack.c.l.b16 %v145
    %v480 = vunpack.c.l.b16 %v146
    %v481 = vunpack.c.l.b16 %v147
    %v482 = vunpack.c.l.b16 %v148
    %v483 = vunpack.c.l.b16 %v149
    %v484 = vunpack.c.l.b16 %v150
    %v485 = vunpack.c.l.b16 %v151
    %v486 = vunpack.c.l.b16 %v152
    %v487 = vunpack.c.l.b16 %v153
    %v488 = vunpack.c.l.b16 %v154
    %v489 = vunpack.c.l.b16 %v155
    %v490 = vunpack.c.l.b16 %v156
    %v491 = vunpack.c.l.b16 %v157
    %v492 = vunpack.c.l.b16 %v158
    %v493 = vunpack.c.l.b16 %v159
    %v494 = vunpack.c.l.b16 %v160
    %v495 = vunpack.c.l.b16 %v161
    %v496 = vunpack.c.l.b16 %v162
    %v497 = vunpack.c.l.b16 %v163
    %v498 = vunpack.c.l.b16 %v164
    %v499 = vunpack.c.l.b16 %v165
    %v500 = vunpack.c.l.b16 %v166
    %v501 = vunpack.c.l.b16 %v167
    %v502 = vunpack.c.l.b16 %v168
    %v503 = vunpack.c.l.b16 %v169
    %v504 = vunpack.c.l.b16 %v170
    %v505 = vunpack.c.l.b16 %v171
    %v506 = vunpack.c.l.b16 %v172
    %v507 = vunpack.c.l.b16 %v173
    %v508 = vunpack.c.l.b16 %v174
    %v509 = vunpack.c.l.b16 %v175
    %v510 = vunpack.c.l.b16 %v176
    %v511 = vunpack.c.l.b16 %v177
    %v512 = vunpack.c.l.b16 %v178
    %v513 = vunpack.c.l.b16 %v179
    %v514 = vunpack.c.l.b16 %v180
    %v515 = vunpack.c.l.b16 %v181
    %v516 = vunpack.c.l.b16 %v182
    %v517 = vunpack.c.l.b16 %v183
    %v518 = vunpack.c.l.b16 %v184
    %v519 = vunpack.c.l.b16 %v185
    %v520 = vunpack.c.l.b16 %v186
    %v521 = vunpack.c.l.b16 %v187
    %v522 = vunpack.c.l.b16 %v188
    %v523 = vunpack.c.l.b16 %v189
    %v524 = vunpack.c.l.b16 %v190
    %v525 = vunpack.c.l.b16 %v191
    %v526 = vunpack.c.l.b16 %v192
    %v527 = vunpack.c.l.b16 %v193
    %v528 = vunpack.c.l.b16 %v194
    %v529 = vunpack.c.l.b16 %v195
    %v530 = vunpack.c.l.b16 %v196
    %v531 = vunpack.c.l.b16 %v197
    %v532 = vunpack.c.l.b16 %v198
    %v533 = vunpack.c.l.b16 %v199
    %v534 = vunpack.c.l.b16 %v200
    %v535 = vunpack.c.l.b16 %v201
    %v536 = vunpack.c.l.b16 %v202
    %v537 = vunpack.c.l.b16 %v203
    %v538 = vunpack.c.l.b16 %v204
    %v539 = vunpack.c.l.b16 %v205
    %v540 = vunpack.c.l.b16 %v206
    %v541 = vunpack.c.l.b16 %v207
    %v542 = vunpack.c.l.b16 %v208
    %v543 = vunpack.c.l.b16 %v209
    %v544 = vunpack.c.l.b16 %v210
    %v545 = vunpack.c.l.b16 %v211
    %v546 = vunpack.c.l.b16 %v212
    %v547 = vunpack.c.l.b16 %v213
    %v548 = vpack.c.b16 %v421, %v420
    %v549 = vpack.c.b16 %v423, %v422
    %v550 = vpack.c.b16 %v425, %v424
    %v551 = vpack.c.b16 %v427, %v426
    %v552 = vpack.c.b16 %v429, %v428
    %v553 = vpack.c.b16 %v431, %v430
    %v554 = vpack.c.b16 %v433, %v432
    %v555 = vpack.c.b16 %v435, %v434
    %v556 = vpack.c.b16 %v437, %v436
    %v557 = vpack.c.b16 %v439, %v438
    %v558 = vpack.c.b16 %v441, %v440
    %v559 = vpack.c.b16 %v443, %v442
    %v560 = vpack.c.b16 %v445, %v444
    %v561 = vpack.c.b16 %v447, %v446
    %v562 = vpack.c.b16 %v449, %v448
    %v563 = vpack.c.b16 %v451, %v450
    %v564 = vpack.c.b16 %v453, %v452
    %v565 = vpack.c.b16 %v455, %v454
    %v566 = vpack.c.b16 %v457, %v456
    %v567 = vpack.c.b16 %v459, %v458
    %v568 = vpack.c.b16 %v461, %v460
    %v569 = vpack.c.b16 %v463, %v462
    %v570 = vpack.c.b16 %v465, %v464
    %v571 = vpack.c.b16 %v467, %v466
    %v572 = vpack.c.b16 %v469, %v468
    %v573 = vpack.c.b16 %v471, %v470
    %v574 = vpack.c.b16 %v473, %v472
    %v575 = vpack.c.b16 %v475, %v474
    %v576 = vpack.c.b16 %v477, %v476
    %v577 = vpack.c.b16 %v479, %v478
    %v578 = vpack.c.b16 %v481, %v480
    %v579 = vpack.c.b16 %v483, %v482
    %v580 = vpack.c.b16 %v485, %v484
    %v581 = vpack.c.b16 %v487, %v486
    %v582 = vpack.c.b16 %v489, %v488
    %v583 = vpack.c.b16 %v491, %v490
    %v584 = vpack.c.b16 %v493, %v492
    %v585 = vpack.c.b16 %v495, %v494
    %v586 = vpack.c.b16 %v497, %v496
    %v587 = vpack.c.b16 %v499, %v498
    %v588 = vpack.c.b16 %v501, %v500
    %v589 = vpack.c.b16 %v503, %v502
    %v590 = vpack.c.b16 %v505, %v504
    %v591 = vpack.c.b16 %v507, %v506
    %v592 = vpack.c.b16 %v509, %v508
    %v593 = vpack.c.b16 %v511, %v510
    %v594 = vpack.c.b16 %v513, %v512
    %v595 = vpack.c.b16 %v515, %v514
    %v596 = vpack.c.b16 %v517, %v516
    %v597 = vpack.c.b16 %v519, %v518
    %v598 = vpack.c.b16 %v521, %v520
    %v599 = vpack.c.b16 %v523, %v522
    %v600 = vpack.c.b16 %v525, %v524
    %v601 = vpack.c.b16 %v527, %v526
    %v602 = vpack.c.b16 %v529, %v528
    %v603 = vpack.c.b16 %v531, %v530
    %v604 = vpack.c.b16 %v533, %v532
    %v605 = vpack.c.b16 %v535, %v534
    %v606 = vpack.c.b16 %v537, %v536
    %v607 = vpack.c.b16 %v539, %v538
    %v608 = vpack.c.b16 %v541, %v540
    %v609 = vpack.c.b16 %v543, %v542
    %v610 = vpack.c.b16 %v545, %v544
    %v611 = vpack.c.b16 %v547, %v546
    %676 = vmatprep.subr.bf16.mxu0 0
    %677 = vmatpush1.bf16.msra.mxu0 %v548
    %678 = vmatprep.subr.bf16.mxu0 0
    %679 = vmatpush1.bf16.msra.mxu0 %v549
    %680 = vmatprep.subr.bf16.mxu0 0
    %681 = vmatpush1.bf16.msra.mxu0 %v550
    %682 = vmatprep.subr.bf16.mxu0 0
    %683 = vmatpush1.bf16.msra.mxu0 %v551
    %684 = vmatprep.subr.bf16.mxu0 0
    %685 = vmatpush1.bf16.msra.mxu0 %v552
    %686 = vmatprep.subr.bf16.mxu0 0
    %687 = vmatpush1.bf16.msra.mxu0 %v553
    %688 = vmatprep.subr.bf16.mxu0 0
    %689 = vmatpush1.bf16.msra.mxu0 %v554
    %690 = vmatprep.subr.bf16.mxu0 0
    %691 = vmatpush1.bf16.msra.mxu0 %v555
    %692 = vmatprep.subr.bf16.mxu0 0
    %693 = vmatpush1.bf16.msra.mxu0 %v556
    %694 = vmatprep.subr.bf16.mxu0 0
    %695 = vmatpush1.bf16.msra.mxu0 %v557
    %696 = vmatprep.subr.bf16.mxu0 0
    %697 = vmatpush1.bf16.msra.mxu0 %v558
    %698 = vmatprep.subr.bf16.mxu0 0
    %699 = vmatpush1.bf16.msra.mxu0 %v559
    %700 = vmatprep.subr.bf16.mxu0 0
    %701 = vmatpush1.bf16.msra.mxu0 %v560
    %702 = vmatprep.subr.bf16.mxu0 0
    %703 = vmatpush1.bf16.msra.mxu0 %v561
    %704 = vmatprep.subr.bf16.mxu0 0
    %705 = vmatpush1.bf16.msra.mxu0 %v562
    %706 = vmatprep.subr.bf16.mxu0 0
    %707 = vmatpush1.bf16.msra.mxu0 %v563
    %708 = vmatprep.mubr.bf16.mxu0 %v277
    %709 = vmatmul.mubr.bf16.gmra.mrb[0].mxu0 %v276
    %v710 = vpop.f32.mrb[0].mxu0
    %v711 = vadd.f32 %v259, %v710
    %v712 = vpop.f32.mrb[0].mxu0
    %v713 = vpop.f32.mrb[0].mxu0
    %v714 = vpop.f32.mrb[0].mxu0
    %715 = vdwg.mxu0
    %716 = vmatprep.subr.bf16.mxu0 0
    %717 = vmatpush1.bf16.msra.mxu0 %v564
    %718 = vmatprep.subr.bf16.mxu0 0
    %719 = vmatpush1.bf16.msra.mxu0 %v565
    %720 = vmatprep.subr.bf16.mxu0 0
    %721 = vmatpush1.bf16.msra.mxu0 %v566
    %722 = vmatprep.subr.bf16.mxu0 0
    %723 = vmatpush1.bf16.msra.mxu0 %v567
    %724 = vmatprep.subr.bf16.mxu0 0
    %725 = vmatpush1.bf16.msra.mxu0 %v568
    %726 = vmatprep.subr.bf16.mxu0 0
    %727 = vmatpush1.bf16.msra.mxu0 %v569
    %728 = vmatprep.subr.bf16.mxu0 0
    %729 = vmatpush1.bf16.msra.mxu0 %v570
    %730 = vmatprep.subr.bf16.mxu0 0
    %731 = vmatpush1.bf16.msra.mxu0 %v571
    %732 = vmatprep.subr.bf16.mxu0 0
    %733 = vmatpush1.bf16.msra.mxu0 %v572
    %734 = vmatprep.subr.bf16.mxu0 0
    %735 = vmatpush1.bf16.msra.mxu0 %v573
    %736 = vmatprep.subr.bf16.mxu0 0
    %737 = vmatpush1.bf16.msra.mxu0 %v574
    %738 = vmatprep.subr.bf16.mxu0 0
    %739 = vmatpush1.bf16.msra.mxu0 %v575
    %740 = vmatprep.subr.bf16.mxu0 0
    %741 = vmatpush1.bf16.msra.mxu0 %v576
    %742 = vmatprep.subr.bf16.mxu0 0
    %743 = vmatpush1.bf16.msra.mxu0 %v577
    %744 = vmatprep.subr.bf16.mxu0 0
    %745 = vmatpush1.bf16.msra.mxu0 %v578
    %746 = vmatprep.subr.bf16.mxu0 0
    %747 = vmatpush1.bf16.msra.mxu0 %v579
    %748 = vmatprep.mubr.bf16.mxu0 %v279
    %749 = vmatmul.mubr.bf16.gmra.mrb[0].mxu0 %v278
    %v750 = vpop.f32.mrb[0].mxu0
    %v751 = vadd.f32 %v711, %v750
    %v752 = vpop.f32.mrb[0].mxu0
    %v753 = vpop.f32.mrb[0].mxu0
    %v754 = vpop.f32.mrb[0].mxu0
    %755 = vdwg.mxu0
    %756 = vmatprep.subr.bf16.mxu0 0
    %757 = vmatpush1.bf16.msra.mxu0 %v580
    %758 = vmatprep.subr.bf16.mxu0 0
    %759 = vmatpush1.bf16.msra.mxu0 %v581
    %760 = vmatprep.subr.bf16.mxu0 0
    %761 = vmatpush1.bf16.msra.mxu0 %v582
    %762 = vmatprep.subr.bf16.mxu0 0
    %763 = vmatpush1.bf16.msra.mxu0 %v583
    %764 = vmatprep.subr.bf16.mxu0 0
    %765 = vmatpush1.bf16.msra.mxu0 %v584
    %766 = vmatprep.subr.bf16.mxu0 0
    %767 = vmatpush1.bf16.msra.mxu0 %v585
    %768 = vmatprep.subr.bf16.mxu0 0
    %769 = vmatpush1.bf16.msra.mxu0 %v586
    %770 = vmatprep.subr.bf16.mxu0 0
    %771 = vmatpush1.bf16.msra.mxu0 %v587
    %772 = vmatprep.subr.bf16.mxu0 0
    %773 = vmatpush1.bf16.msra.mxu0 %v588
    %774 = vmatprep.subr.bf16.mxu0 0
    %775 = vmatpush1.bf16.msra.mxu0 %v589
    %776 = vmatprep.subr.bf16.mxu0 0
    %777 = vmatpush1.bf16.msra.mxu0 %v590
    %778 = vmatprep.subr.bf16.mxu0 0
    %779 = vmatpush1.bf16.msra.mxu0 %v591
    %780 = vmatprep.subr.bf16.mxu0 0
    %781 = vmatpush1.bf16.msra.mxu0 %v592
    %782 = vmatprep.subr.bf16.mxu0 0
    %783 = vmatpush1.bf16.msra.mxu0 %v593
    %784 = vmatprep.subr.bf16.mxu0 0
    %785 = vmatpush1.bf16.msra.mxu0 %v594
    %786 = vmatprep.subr.bf16.mxu0 0
    %787 = vmatpush1.bf16.msra.mxu0 %v595
    %788 = vmatprep.mubr.bf16.mxu0 %v281
    %789 = vmatmul.mubr.bf16.gmra.mrb[0].mxu0 %v280
    %v790 = vpop.f32.mrb[0].mxu0
    %v791 = vadd.f32 %v751, %v790
    %v792 = vpop.f32.mrb[0].mxu0
    %v793 = vpop.f32.mrb[0].mxu0
    %v794 = vpop.f32.mrb[0].mxu0
    %795 = vdwg.mxu0
    %796 = vmatprep.subr.bf16.mxu0 0
    %797 = vmatpush1.bf16.msra.mxu0 %v596
    %798 = vmatprep.subr.bf16.mxu0 0
    %799 = vmatpush1.bf16.msra.mxu0 %v597
    %800 = vmatprep.subr.bf16.mxu0 0
    %801 = vmatpush1.bf16.msra.mxu0 %v598
    %802 = vmatprep.subr.bf16.mxu0 0
    %803 = vmatpush1.bf16.msra.mxu0 %v599
    %804 = vmatprep.subr.bf16.mxu0 0
    %805 = vmatpush1.bf16.msra.mxu0 %v600
    %806 = vmatprep.subr.bf16.mxu0 0
    %807 = vmatpush1.bf16.msra.mxu0 %v601
    %808 = vmatprep.subr.bf16.mxu0 0
    %809 = vmatpush1.bf16.msra.mxu0 %v602
    %810 = vmatprep.subr.bf16.mxu0 0
    %811 = vmatpush1.bf16.msra.mxu0 %v603
    %812 = vmatprep.subr.bf16.mxu0 0
    %813 = vmatpush1.bf16.msra.mxu0 %v604
    %814 = vmatprep.subr.bf16.mxu0 0
    %815 = vmatpush1.bf16.msra.mxu0 %v605
    %816 = vmatprep.subr.bf16.mxu0 0
    %817 = vmatpush1.bf16.msra.mxu0 %v606
    %818 = vmatprep.subr.bf16.mxu0 0
    %819 = vmatpush1.bf16.msra.mxu0 %v607
    %820 = vmatprep.subr.bf16.mxu0 0
    %821 = vmatpush1.bf16.msra.mxu0 %v608
    %822 = vmatprep.subr.bf16.mxu0 0
    %823 = vmatpush1.bf16.msra.mxu0 %v609
    %824 = vmatprep.subr.bf16.mxu0 0
    %825 = vmatpush1.bf16.msra.mxu0 %v610
    %826 = vmatprep.subr.bf16.mxu0 0
    %827 = vmatpush1.bf16.msra.mxu0 %v611
    %828 = vmatprep.mubr.bf16.mxu0 %v283
    %829 = vmatmul.mubr.bf16.gmra.mrb[0].mxu0 %v282
    %v830 = vpop.f32.mrb[0].mxu0
    %v831 = vadd.f32 %v791, %v830
    %v832 = vpop.f32.mrb[0].mxu0
    %v833 = vpop.f32.mrb[0].mxu0
    %v834 = vpop.f32.mrb[0].mxu0
    %835 = vdwg.mxu0
    %v836 = vld [vmem:[%s4] sm:$0x1]
    %v838 = vlaneseq
    %v839 = vshrl.u32 %v838, 7
    %v840 = vsub.s32 0, %v839
    %v841 = vrot.slane %v836, %v840
    %v843 = vadd.f32 %v831, %v841
    %v844 = vmax.f32 %v843, 0.0
    %v845 = vpack.c.bf16 %v844, %v844
    %v846 = vlaneseq
    %v847 = vand.u32 %v846, 127
    %vm848 = vcmp.lt.s32.totalorder %v847, 8
    %v849 = vld [vmem:[#allocation8 + $0xc] sm:$0xf]
    %v850 = vld [vmem:[#allocation8 + $0x1c] sm:$0xf]
    %v851 = vld [vmem:[#allocation8 + $0x2c] sm:$0xf]
    %v852 = vld [vmem:[#allocation8 + $0x3c] sm:$0xf]
    %v853 = vld [vmem:[#allocation8 + $0x4c] sm:$0xf]
    %v854 = vld [vmem:[#allocation8 + $0x5c] sm:$0xf]
    %v855 = vld [vmem:[#allocation8 + $0x6c] sm:$0xf]
    %v856 = vld [vmem:[#allocation8 + $0x7c] sm:$0xf]
    %v857 = vld [vmem:[#allocation8 + $0x8c] sm:$0xf]
    %v858 = vld [vmem:[#allocation8 + $0x9c] sm:$0xf]
    %v859 = vld [vmem:[#allocation8 + $0xac] sm:$0xf]
    %v860 = vld [vmem:[#allocation8 + $0xbc] sm:$0xf]
    %v861 = vld [vmem:[#allocation8 + $0xcc] sm:$0xf]
    %v862 = vld [vmem:[#allocation8 + $0xdc] sm:$0xf]
    %v863 = vld [vmem:[#allocation8 + $0xec] sm:$0xf]
    %v864 = vld [vmem:[#allocation8 + $0xfc] sm:$0xf]
    %v865 = vld [vmem:[%s6 + $0x3] sm:$0x1]
    %v867 = vlaneseq
    %v868 = vshrl.u32 %v867, 7
    %v869 = vsub.s32 0, %v868
    %v870 = vrot.slane %v865, %v869
    %v888 = vunpack.c.l.b16 %v849
    %v889 = vunpack.c.l.b16 %v850
    %v890 = vunpack.c.l.b16 %v851
    %v891 = vunpack.c.l.b16 %v852
    %v892 = vunpack.c.l.b16 %v853
    %v893 = vunpack.c.l.b16 %v854
    %v894 = vunpack.c.l.b16 %v855
    %v895 = vunpack.c.l.b16 %v856
    %v896 = vunpack.c.l.b16 %v857
    %v897 = vunpack.c.l.b16 %v858
    %v898 = vunpack.c.l.b16 %v859
    %v899 = vunpack.c.l.b16 %v860
    %v900 = vunpack.c.l.b16 %v861
    %v901 = vunpack.c.l.b16 %v862
    %v902 = vunpack.c.l.b16 %v863
    %v903 = vunpack.c.l.b16 %v864
    %v904 = vpack.c.b16 %v889, %v888
    %v905 = vpack.c.b16 %v891, %v890
    %v906 = vpack.c.b16 %v893, %v892
    %v907 = vpack.c.b16 %v895, %v894
    %v908 = vpack.c.b16 %v897, %v896
    %v909 = vpack.c.b16 %v899, %v898
    %v910 = vpack.c.b16 %v901, %v900
    %v911 = vpack.c.b16 %v903, %v902
    %920 = vmatprep.subr.bf16.mxu0 0
    %921 = vmatpush1.bf16.msra.mxu0 %v904
    %922 = vmatprep.subr.bf16.mxu0 0
    %923 = vmatpush1.bf16.msra.mxu0 %v905
    %924 = vmatprep.subr.bf16.mxu0 0
    %925 = vmatpush1.bf16.msra.mxu0 %v906
    %926 = vmatprep.subr.bf16.mxu0 0
    %927 = vmatpush1.bf16.msra.mxu0 %v907
    %928 = vmatprep.subr.bf16.mxu0 0
    %929 = vmatpush1.bf16.msra.mxu0 %v908
    %930 = vmatprep.subr.bf16.mxu0 0
    %931 = vmatpush1.bf16.msra.mxu0 %v909
    %932 = vmatprep.subr.bf16.mxu0 0
    %933 = vmatpush1.bf16.msra.mxu0 %v910
    %934 = vmatprep.subr.bf16.mxu0 0
    %935 = vmatpush1.bf16.msra.mxu0 %v911
    %936 = vmatprep.subr.bf16.mxu0 0
    %937 = vmatpush1.bf16.msra.mxu0 0
    %938 = vmatprep.subr.bf16.mxu0 0
    %939 = vmatpush1.bf16.msra.mxu0 0
    %940 = vmatprep.subr.bf16.mxu0 0
    %941 = vmatpush1.bf16.msra.mxu0 0
    %942 = vmatprep.subr.bf16.mxu0 0
    %943 = vmatpush1.bf16.msra.mxu0 0
    %944 = vmatprep.subr.bf16.mxu0 0
    %945 = vmatpush1.bf16.msra.mxu0 0
    %946 = vmatprep.subr.bf16.mxu0 0
    %947 = vmatpush1.bf16.msra.mxu0 0
    %948 = vmatprep.subr.bf16.mxu0 0
    %949 = vmatpush1.bf16.msra.mxu0 0
    %950 = vmatprep.subr.bf16.mxu0 0
    %951 = vmatpush1.bf16.msra.mxu0 0
    %952 = vmatprep.mubr.bf16.mxu0 0
    %953 = vmatmul.mubr.bf16.gmra.mrb[0].mxu0 %v845
    %v954 = vpop.f32.mrb[0].mxu0
    %v955 = vadd.f32 %v870, %v954
    %v956 = vpop.f32.mrb[0].mxu0
    %v957 = vpop.f32.mrb[0].mxu0
    %v958 = vpop.f32.mrb[0].mxu0
    %959 = vdwg.mxu0
    %v960 = vmul.f32 %v955, 0.33333334
    %961 = vst [vmem:[#allocation10] sm:$0xff] %v960
    %v962 = vld [vmem:[#allocation8] sm:$0xf]
    %v963 = vld [vmem:[#allocation8 + $0x10] sm:$0xf]
    %v964 = vld [vmem:[#allocation8 + $0x20] sm:$0xf]
    %v965 = vld [vmem:[#allocation8 + $0x30] sm:$0xf]
    %v966 = vld [vmem:[#allocation8 + $0x40] sm:$0xf]
    %v967 = vld [vmem:[#allocation8 + $0x50] sm:$0xf]
    %v968 = vld [vmem:[#allocation8 + $0x60] sm:$0xf]
    %v969 = vld [vmem:[#allocation8 + $0x70] sm:$0xf]
    %v970 = vld [vmem:[#allocation8 + $0x80] sm:$0xf]
    %v971 = vld [vmem:[#allocation8 + $0x90] sm:$0xf]
    %v972 = vld [vmem:[#allocation8 + $0xa0] sm:$0xf]
    %v973 = vld [vmem:[#allocation8 + $0xb0] sm:$0xf]
    %v974 = vld [vmem:[#allocation8 + $0xc0] sm:$0xf]
    %v975 = vld [vmem:[#allocation8 + $0xd0] sm:$0xf]
    %v976 = vld [vmem:[#allocation8 + $0xe0] sm:$0xf]
    %v977 = vld [vmem:[#allocation8 + $0xf0] sm:$0xf]
    %v978 = vld [vmem:[%s6] sm:$0x1]
    %v980 = vlaneseq
    %v981 = vshrl.u32 %v980, 7
    %v982 = vsub.s32 0, %v981
    %v983 = vrot.slane %v978, %v982
    %v1001 = vunpack.c.l.b16 %v962
    %v1002 = vunpack.c.l.b16 %v963
    %v1003 = vunpack.c.l.b16 %v964
    %v1004 = vunpack.c.l.b16 %v965
    %v1005 = vunpack.c.l.b16 %v966
    %v1006 = vunpack.c.l.b16 %v967
    %v1007 = vunpack.c.l.b16 %v968
    %v1008 = vunpack.c.l.b16 %v969
    %v1009 = vunpack.c.l.b16 %v970
    %v1010 = vunpack.c.l.b16 %v971
    %v1011 = vunpack.c.l.b16 %v972
    %v1012 = vunpack.c.l.b16 %v973
    %v1013 = vunpack.c.l.b16 %v974
    %v1014 = vunpack.c.l.b16 %v975
    %v1015 = vunpack.c.l.b16 %v976
    %v1016 = vunpack.c.l.b16 %v977
    %v1017 = vpack.c.b16 %v1002, %v1001
    %v1018 = vpack.c.b16 %v1004, %v1003
    %v1019 = vpack.c.b16 %v1006, %v1005
    %v1020 = vpack.c.b16 %v1008, %v1007
    %v1021 = vpack.c.b16 %v1010, %v1009
    %v1022 = vpack.c.b16 %v1012, %v1011
    %v1023 = vpack.c.b16 %v1014, %v1013
    %v1024 = vpack.c.b16 %v1016, %v1015
    %1033 = vmatprep.subr.bf16.mxu0 0
    %1034 = vmatpush1.bf16.msra.mxu0 %v1017
    %1035 = vmatprep.subr.bf16.mxu0 0
    %1036 = vmatpush1.bf16.msra.mxu0 %v1018
    %1037 = vmatprep.subr.bf16.mxu0 0
    %1038 = vmatpush1.bf16.msra.mxu0 %v1019
    %1039 = vmatprep.subr.bf16.mxu0 0
    %1040 = vmatpush1.bf16.msra.mxu0 %v1020
    %1041 = vmatprep.subr.bf16.mxu0 0
    %1042 = vmatpush1.bf16.msra.mxu0 %v1021
    %1043 = vmatprep.subr.bf16.mxu0 0
    %1044 = vmatpush1.bf16.msra.mxu0 %v1022
    %1045 = vmatprep.subr.bf16.mxu0 0
    %1046 = vmatpush1.bf16.msra.mxu0 %v1023
    %1047 = vmatprep.subr.bf16.mxu0 0
    %1048 = vmatpush1.bf16.msra.mxu0 %v1024
    %1049 = vmatprep.subr.bf16.mxu0 0
    %1050 = vmatpush1.bf16.msra.mxu0 0
    %1051 = vmatprep.subr.bf16.mxu0 0
    %1052 = vmatpush1.bf16.msra.mxu0 0
    %1053 = vmatprep.subr.bf16.mxu0 0
    %1054 = vmatpush1.bf16.msra.mxu0 0
    %1055 = vmatprep.subr.bf16.mxu0 0
    %1056 = vmatpush1.bf16.msra.mxu0 0
    %1057 = vmatprep.subr.bf16.mxu0 0
    %1058 = vmatpush1.bf16.msra.mxu0 0
    %1059 = vmatprep.subr.bf16.mxu0 0
    %1060 = vmatpush1.bf16.msra.mxu0 0
    %1061 = vmatprep.subr.bf16.mxu0 0
    %1062 = vmatpush1.bf16.msra.mxu0 0
    %1063 = vmatprep.subr.bf16.mxu0 0
    %1064 = vmatpush1.bf16.msra.mxu0 0
    %1065 = vmatprep.mubr.bf16.mxu0 0
    %1066 = vmatmul.mubr.bf16.gmra.mrb[0].mxu0 %v845
    %v1067 = vpop.f32.mrb[0].mxu0
    %v1068 = vadd.f32 %v983, %v1067
    %v1069 = vpop.f32.mrb[0].mxu0
    %v1070 = vpop.f32.mrb[0].mxu0
    %v1071 = vpop.f32.mrb[0].mxu0
    %1072 = vdwg.mxu0
    %v1073 = vsel %vm848, %v1068, -1e+30
    %1074 = vmax.xlane.f32.xlu0 %v1073
    %v1075 = vpop.xlane.xlu0 %1074
    %v1076 = vsub.f32 %v1073, %v1075
    %v1077 = vmul.f32 %v1076, 1.442695
    %v1078 = vpow.pop %v1077
    %1079 = vadd.xlane.f32.xlu0 %v1078
    %v1080 = vpop.xlane.xlu0 %1079
    %v1081 = vrcp.pop %v1080
    %v1082 = vmul.f32 %v1078, %v1081
    %v1083 = vadd.f32 %v1082, 0.0
    %v1084 = vld [vmem:[#allocation8 + $0x4] sm:$0xf]
    %v1085 = vld [vmem:[#allocation8 + $0x14] sm:$0xf]
    %v1086 = vld [vmem:[#allocation8 + $0x24] sm:$0xf]
    %v1087 = vld [vmem:[#allocation8 + $0x34] sm:$0xf]
    %v1088 = vld [vmem:[#allocation8 + $0x44] sm:$0xf]
    %v1089 = vld [vmem:[#allocation8 + $0x54] sm:$0xf]
    %v1090 = vld [vmem:[#allocation8 + $0x64] sm:$0xf]
    %v1091 = vld [vmem:[#allocation8 + $0x74] sm:$0xf]
    %v1092 = vld [vmem:[#allocation8 + $0x84] sm:$0xf]
    %v1093 = vld [vmem:[#allocation8 + $0x94] sm:$0xf]
    %v1094 = vld [vmem:[#allocation8 + $0xa4] sm:$0xf]
    %v1095 = vld [vmem:[#allocation8 + $0xb4] sm:$0xf]
    %v1096 = vld [vmem:[#allocation8 + $0xc4] sm:$0xf]
    %v1097 = vld [vmem:[#allocation8 + $0xd4] sm:$0xf]
    %v1098 = vld [vmem:[#allocation8 + $0xe4] sm:$0xf]
    %v1099 = vld [vmem:[#allocation8 + $0xf4] sm:$0xf]
    %v1100 = vld [vmem:[%s6 + $0x1] sm:$0x1]
    %v1102 = vlaneseq
    %v1103 = vshrl.u32 %v1102, 7
    %v1104 = vsub.s32 0, %v1103
    %v1105 = vrot.slane %v1100, %v1104
    %v1123 = vunpack.c.l.b16 %v1084
    %v1124 = vunpack.c.l.b16 %v1085
    %v1125 = vunpack.c.l.b16 %v1086
    %v1126 = vunpack.c.l.b16 %v1087
    %v1127 = vunpack.c.l.b16 %v1088
    %v1128 = vunpack.c.l.b16 %v1089
    %v1129 = vunpack.c.l.b16 %v1090
    %v1130 = vunpack.c.l.b16 %v1091
    %v1131 = vunpack.c.l.b16 %v1092
    %v1132 = vunpack.c.l.b16 %v1093
    %v1133 = vunpack.c.l.b16 %v1094
    %v1134 = vunpack.c.l.b16 %v1095
    %v1135 = vunpack.c.l.b16 %v1096
    %v1136 = vunpack.c.l.b16 %v1097
    %v1137 = vunpack.c.l.b16 %v1098
    %v1138 = vunpack.c.l.b16 %v1099
    %v1139 = vpack.c.b16 %v1124, %v1123
    %v1140 = vpack.c.b16 %v1126, %v1125
    %v1141 = vpack.c.b16 %v1128, %v1127
    %v1142 = vpack.c.b16 %v1130, %v1129
    %v1143 = vpack.c.b16 %v1132, %v1131
    %v1144 = vpack.c.b16 %v1134, %v1133
    %v1145 = vpack.c.b16 %v1136, %v1135
    %v1146 = vpack.c.b16 %v1138, %v1137
    %1155 = vmatprep.subr.bf16.mxu0 0
    %1156 = vmatpush1.bf16.msra.mxu0 %v1139
    %1157 = vmatprep.subr.bf16.mxu0 0
    %1158 = vmatpush1.bf16.msra.mxu0 %v1140
    %1159 = vmatprep.subr.bf16.mxu0 0
    %1160 = vmatpush1.bf16.msra.mxu0 %v1141
    %1161 = vmatprep.subr.bf16.mxu0 0
    %1162 = vmatpush1.bf16.msra.mxu0 %v1142
    %1163 = vmatprep.subr.bf16.mxu0 0
    %1164 = vmatpush1.bf16.msra.mxu0 %v1143
    %1165 = vmatprep.subr.bf16.mxu0 0
    %1166 = vmatpush1.bf16.msra.mxu0 %v1144
    %1167 = vmatprep.subr.bf16.mxu0 0
    %1168 = vmatpush1.bf16.msra.mxu0 %v1145
    %1169 = vmatprep.subr.bf16.mxu0 0
    %1170 = vmatpush1.bf16.msra.mxu0 %v1146
    %1171 = vmatprep.subr.bf16.mxu0 0
    %1172 = vmatpush1.bf16.msra.mxu0 0
    %1173 = vmatprep.subr.bf16.mxu0 0
    %1174 = vmatpush1.bf16.msra.mxu0 0
    %1175 = vmatprep.subr.bf16.mxu0 0
    %1176 = vmatpush1.bf16.msra.mxu0 0
    %1177 = vmatprep.subr.bf16.mxu0 0
    %1178 = vmatpush1.bf16.msra.mxu0 0
    %1179 = vmatprep.subr.bf16.mxu0 0
    %1180 = vmatpush1.bf16.msra.mxu0 0
    %1181 = vmatprep.subr.bf16.mxu0 0
    %1182 = vmatpush1.bf16.msra.mxu0 0
    %1183 = vmatprep.subr.bf16.mxu0 0
    %1184 = vmatpush1.bf16.msra.mxu0 0
    %1185 = vmatprep.subr.bf16.mxu0 0
    %1186 = vmatpush1.bf16.msra.mxu0 0
    %1187 = vmatprep.mubr.bf16.mxu0 0
    %1188 = vmatmul.mubr.bf16.gmra.mrb[0].mxu0 %v845
    %v1189 = vpop.f32.mrb[0].mxu0
    %v1190 = vadd.f32 %v1105, %v1189
    %v1191 = vpop.f32.mrb[0].mxu0
    %v1192 = vpop.f32.mrb[0].mxu0
    %v1193 = vpop.f32.mrb[0].mxu0
    %1194 = vdwg.mxu0
    %v1195 = vsel %vm848, %v1190, -1e+30
    %1196 = vmax.xlane.f32.xlu0 %v1195
    %v1197 = vpop.xlane.xlu0 %1196
    %v1198 = vsub.f32 %v1195, %v1197
    %v1199 = vmul.f32 %v1198, 1.442695
    %v1200 = vpow.pop %v1199
    %1201 = vadd.xlane.f32.xlu0 %v1200
    %v1202 = vpop.xlane.xlu0 %1201
    %v1203 = vrcp.pop %v1202
    %v1204 = vmul.f32 %v1200, %v1203
    %v1205 = vadd.f32 %v1083, %v1204
    %v1206 = vld [vmem:[#allocation8 + $0x8] sm:$0xf]
    %v1207 = vld [vmem:[#allocation8 + $0x18] sm:$0xf]
    %v1208 = vld [vmem:[#allocation8 + $0x28] sm:$0xf]
    %v1209 = vld [vmem:[#allocation8 + $0x38] sm:$0xf]
    %v1210 = vld [vmem:[#allocation8 + $0x48] sm:$0xf]
    %v1211 = vld [vmem:[#allocation8 + $0x58] sm:$0xf]
    %v1212 = vld [vmem:[#allocation8 + $0x68] sm:$0xf]
    %v1213 = vld [vmem:[#allocation8 + $0x78] sm:$0xf]
    %v1214 = vld [vmem:[#allocation8 + $0x88] sm:$0xf]
    %v1215 = vld [vmem:[#allocation8 + $0x98] sm:$0xf]
    %v1216 = vld [vmem:[#allocation8 + $0xa8] sm:$0xf]
    %v1217 = vld [vmem:[#allocation8 + $0xb8] sm:$0xf]
    %v1218 = vld [vmem:[#allocation8 + $0xc8] sm:$0xf]
    %v1219 = vld [vmem:[#allocation8 + $0xd8] sm:$0xf]
    %v1220 = vld [vmem:[#allocation8 + $0xe8] sm:$0xf]
    %v1221 = vld [vmem:[#allocation8 + $0xf8] sm:$0xf]
    %v1222 = vld [vmem:[%s6 + $0x2] sm:$0x1]
    %v1224 = vlaneseq
    %v1225 = vshrl.u32 %v1224, 7
    %v1226 = vsub.s32 0, %v1225
    %v1227 = vrot.slane %v1222, %v1226
    %v1245 = vunpack.c.l.b16 %v1206
    %v1246 = vunpack.c.l.b16 %v1207
    %v1247 = vunpack.c.l.b16 %v1208
    %v1248 = vunpack.c.l.b16 %v1209
    %v1249 = vunpack.c.l.b16 %v1210
    %v1250 = vunpack.c.l.b16 %v1211
    %v1251 = vunpack.c.l.b16 %v1212
    %v1252 = vunpack.c.l.b16 %v1213
    %v1253 = vunpack.c.l.b16 %v1214
    %v1254 = vunpack.c.l.b16 %v1215
    %v1255 = vunpack.c.l.b16 %v1216
    %v1256 = vunpack.c.l.b16 %v1217
    %v1257 = vunpack.c.l.b16 %v1218
    %v1258 = vunpack.c.l.b16 %v1219
    %v1259 = vunpack.c.l.b16 %v1220
    %v1260 = vunpack.c.l.b16 %v1221
    %v1261 = vpack.c.b16 %v1246, %v1245
    %v1262 = vpack.c.b16 %v1248, %v1247
    %v1263 = vpack.c.b16 %v1250, %v1249
    %v1264 = vpack.c.b16 %v1252, %v1251
    %v1265 = vpack.c.b16 %v1254, %v1253
    %v1266 = vpack.c.b16 %v1256, %v1255
    %v1267 = vpack.c.b16 %v1258, %v1257
    %v1268 = vpack.c.b16 %v1260, %v1259
    %1277 = vmatprep.subr.bf16.mxu0 0
    %1278 = vmatpush1.bf16.msra.mxu0 %v1261
    %1279 = vmatprep.subr.bf16.mxu0 0
    %1280 = vmatpush1.bf16.msra.mxu0 %v1262
    %1281 = vmatprep.subr.bf16.mxu0 0
    %1282 = vmatpush1.bf16.msra.mxu0 %v1263
    %1283 = vmatprep.subr.bf16.mxu0 0
    %1284 = vmatpush1.bf16.msra.mxu0 %v1264
    %1285 = vmatprep.subr.bf16.mxu0 0
    %1286 = vmatpush1.bf16.msra.mxu0 %v1265
    %1287 = vmatprep.subr.bf16.mxu0 0
    %1288 = vmatpush1.bf16.msra.mxu0 %v1266
    %1289 = vmatprep.subr.bf16.mxu0 0
    %1290 = vmatpush1.bf16.msra.mxu0 %v1267
    %1291 = vmatprep.subr.bf16.mxu0 0
    %1292 = vmatpush1.bf16.msra.mxu0 %v1268
    %1293 = vmatprep.subr.bf16.mxu0 0
    %1294 = vmatpush1.bf16.msra.mxu0 0
    %1295 = vmatprep.subr.bf16.mxu0 0
    %1296 = vmatpush1.bf16.msra.mxu0 0
    %1297 = vmatprep.subr.bf16.mxu0 0
    %1298 = vmatpush1.bf16.msra.mxu0 0
    %1299 = vmatprep.subr.bf16.mxu0 0
    %1300 = vmatpush1.bf16.msra.mxu0 0
    %1301 = vmatprep.subr.bf16.mxu0 0
    %1302 = vmatpush1.bf16.msra.mxu0 0
    %1303 = vmatprep.subr.bf16.mxu0 0
    %1304 = vmatpush1.bf16.msra.mxu0 0
    %1305 = vmatprep.subr.bf16.mxu0 0
    %1306 = vmatpush1.bf16.msra.mxu0 0
    %1307 = vmatprep.subr.bf16.mxu0 0
    %1308 = vmatpush1.bf16.msra.mxu0 0
    %1309 = vmatprep.mubr.bf16.mxu0 0
    %1310 = vmatmul.mubr.bf16.gmra.mrb[0].mxu0 %v845
    %v1311 = vpop.f32.mrb[0].mxu0
    %v1312 = vadd.f32 %v1227, %v1311
    %v1313 = vpop.f32.mrb[0].mxu0
    %v1314 = vpop.f32.mrb[0].mxu0
    %v1315 = vpop.f32.mrb[0].mxu0
    %1316 = vdwg.mxu0
    %v1317 = vsel %vm848, %v1312, -1e+30
    %1318 = vmax.xlane.f32.xlu0 %v1317
    %v1319 = vpop.xlane.xlu0 %1318
    %v1320 = vsub.f32 %v1317, %v1319
    %v1321 = vmul.f32 %v1320, 1.442695
    %v1322 = vpow.pop %v1321
    %1323 = vadd.xlane.f32.xlu0 %v1322
    %v1324 = vpop.xlane.xlu0 %1323
    %v1325 = vrcp.pop %v1324
    %v1326 = vmul.f32 %v1322, %v1325
    %v1327 = vadd.f32 %v1205, %v1326
    %v1328 = vmul.f32 %v1327, 0.33333334
    %1329 = vst [vmem:[#allocation11] sm:$0xff] %v1328
    // Predicated region
    $region46: #{tpu_custom_call.1} parent=1 // pred_check
      _
    $region47: #{tpu_custom_call.1} parent=1 // pred_check_branch
      %1331 = sbr.rel (0) target = $region49
    $region48: #{tpu_custom_call.1} parent=1 // pred_region
      %s1333 = ssub.s32 128, 128
      %1334 = vsyncadd [#allocation4], %s1333
      %s1336 = sshll.u32 [#allocation10], 4
      %s1337 = int_to_ptr.vmem [resolvable:$true] %s1336
      %1339 = dma.vmem_to_hbm [thread:$0]  %s1337, 128, %s7, [#allocation4]
    $region49: #{tpu_custom_call.1} parent=1 // pred_fallthru
      _
    // Predicated region
    $region50: #{tpu_custom_call.1} parent=1 // pred_check
      _
    $region51: #{tpu_custom_call.1} parent=1 // pred_check_branch
      %1341 = sbr.rel (0) target = $region53
    $region52: #{tpu_custom_call.1} parent=1 // pred_region
      %s1343 = ssub.s32 128, 128
      %1344 = vsyncadd [#allocation12], %s1343
      %s1346 = sshll.u32 [#allocation11], 4
      %s1347 = int_to_ptr.vmem [resolvable:$true] %s1346
      %1349 = dma.vmem_to_hbm [thread:$0]  %s1347, 128, %s8, [#allocation12]
    $region53: #{tpu_custom_call.1} parent=1 // pred_fallthru
      _
    // Predicated region
    $region54: #{tpu_custom_call.1} parent=1 // pred_check
      _
    $region55: #{tpu_custom_call.1} parent=1 // pred_check_branch
      %1351 = sbr.rel (0) target = $region57
    $region56: #{tpu_custom_call.1} parent=1 // pred_region
      %1352 = dma.done [#allocation4], 128
    $region57: #{tpu_custom_call.1} parent=1 // pred_fallthru
      _
    // Predicated region
    $region58: #{tpu_custom_call.1} parent=1 // pred_check
      _
    $region59: #{tpu_custom_call.1} parent=1 // pred_check_branch
      %1354 = sbr.rel (0) target = $region61
    $region60: #{tpu_custom_call.1} parent=1 // pred_region
      %1355 = dma.done [#allocation12], 128
    $region61: #{tpu_custom_call.1} parent=1 // pred_fallthru
      _
    %1356 = vsyncpa [#allocation3], 1
    %1357 = vsyncpa [#allocation6], 1
    %1358 = vsyncpa [#allocation9], 1
    %1359 = vsyncpa [#allocation4], 1
    %1360 = vsyncpa [#allocation12], 1

</llo_original>
